<compile_context>
chip_gen: v6e
topology: v6e:2x2x1
jax: 0.10.0
libtpu: 0.0.40
codegen_flags: <defaults>
</compile_context>

<pallas_src>
import math

import jax
import jax.numpy as jnp
import numpy as np
from jax.experimental import pallas as pl
from jax.experimental.pallas import tpu as pltpu


# ----------------------------- kernel body ----------------------------------
def _make_encoder_kernel(num_heads: int, head_dim: int, block_b: int,
                         seq_len: int, d_model: int, exp_in_bf16: bool):
    H, hd, S, D = num_heads, head_dim, seq_len, d_model
    M = block_b * S
    eps = 1e-5

    def _layer_norm(v, g, b):
        # v: [M, D] f32;  g, b: [1, D] f32
        mu = jnp.mean(v, axis=-1, keepdims=True)
        var = jnp.mean((v - mu) ** 2, axis=-1, keepdims=True)
        return (v - mu) * jax.lax.rsqrt(var + eps) * g + b

    def kernel(x_ref,
               wqkv_ref, bqkv_ref,      # [D, 3D] bf16, [1, 3D] f32  ([Q|K|V] layout)
               wo_ref, bo_ref,          # [D, D]  bf16, [1, D]  f32
               g1_ref, be1_ref,         # [1, D] f32
               w1_ref, b1_ref,          # [D, F] bf16, [1, F] f32
               w2_ref, b2_ref,          # [F, D] bf16, [1, D] f32
               g2_ref, be2_ref,         # [1, D] f32
               o_ref,
               qkv_t_scr,               # VMEM [block_b, 3D, S] bf16
               val_t_scr):              # VMEM [block_b, D, S]  f32
        x = x_ref[...].reshape(M, D)                        # f32 residual stream

        # ---- fused QKV projection (scale already folded into Q columns) ----
        qkv = jnp.dot(x.astype(jnp.bfloat16), wqkv_ref[...],
                      preferred_element_type=jnp.float32) + bqkv_ref[...]
        # Single transpose + single bf16 cast for the whole block; the per-item
        # loop below only slices this scratch (no per-item casts or big transposes).
        qkv_t_scr[...] = jnp.swapaxes(
            qkv.reshape(block_b, S, 3 * D), 1, 2).astype(jnp.bfloat16)

        # ---- head-batched self attention, one batch item per loop step ------
        @pl.loop(0, block_b)
        def _attention(bi):
            qkv_t = qkv_t_scr[bi]                           # [3D, S] bf16
            q_t = qkv_t[0 * D:1 * D].reshape(H, hd, S)
            k_t = qkv_t[1 * D:2 * D].reshape(H, hd, S)
            v_t = qkv_t[2 * D:3 * D].reshape(H, hd, S)
            q = jnp.swapaxes(q_t, 1, 2)                     # [H, S, hd]

            # logits[h, i, j] = sum_d q[h, i, d] * k[h, d, j]  (leading batch dim)
            logits = jnp.einsum("hid,hdj->hij", q, k_t,
                                preferred_element_type=jnp.float32)
            logits = logits - jnp.max(logits, axis=-1, keepdims=True)
            if exp_in_bf16:
                # bf16 EUP exp path (v6e/v7x); row-sum + reciprocal stay f32.
                e = jnp.exp(logits.astype(jnp.bfloat16)).astype(jnp.float32)
            else:
                e = jnp.exp(logits)
            p = e * pl.reciprocal(jnp.sum(e, axis=-1, keepdims=True), approx=True)

            # vals_t[h, d, i] = sum_j v[h, d, j] * p[h, i, j]
            vals_t = jnp.einsum("hdj,hij->hdi", v_t, p.astype(jnp.bfloat16),
                                preferred_element_type=jnp.float32)
            val_t_scr[bi] = vals_t.reshape(D, S)            # head-major rows

        # one transpose back for the whole block
        values = jnp.swapaxes(val_t_scr[...], 1, 2).reshape(M, D)   # [M, D] f32
        attn_out = jnp.dot(values.astype(jnp.bfloat16), wo_ref[...],
                           preferred_element_type=jnp.float32) + bo_ref[...]

        # ---- residual + LayerNorm 1 -----------------------------------------
        y = _layer_norm(x + attn_out, g1_ref[...], be1_ref[...])

        # ---- feed-forward -----------------------------------------------------
        h1 = jnp.dot(y.astype(jnp.bfloat16), w1_ref[...],
                     preferred_element_type=jnp.float32) + b1_ref[...]
        h1 = jnp.maximum(h1, 0.0).astype(jnp.bfloat16)      # bf16 right after ReLU
        ff = jnp.dot(h1, w2_ref[...],
                     preferred_element_type=jnp.float32) + b2_ref[...]

        # ---- residual + LayerNorm 2 ------------------------------------------
        out = _layer_norm(y + ff, g2_ref[...], be2_ref[...])
        o_ref[...] = out.reshape(block_b, S, D).astype(o_ref.dtype)

    return kernel


# ------------------------ generation-aware config ----------------------------
def _tpu_generation():
    try:
        kind = jax.devices()[0].device_kind.lower()
    except Exception:
        return None
    if "v7" in kind or "tpu7" in kind:
        return "v7x"
    if "v6" in kind:
        return "v6e"
    if "v5" in kind and ("lite" in kind or "v5e" in kind or "litepod" in kind):
        return "v5e"
    return None


def _tpu_config():
    gen = _tpu_generation()
    try:
        vmem_cap = int(pltpu.get_tpu_info().vmem_capacity_bytes)
    except Exception:
        vmem_cap = {"v7x": 64, "v6e": 128, "v5e": 128}.get(gen, 64) * 1024 * 1024
    return dict(
        # leave ~15% headroom for compiler scratch + double-buffered x/out blocks
        vmem_limit_bytes=int(vmem_cap * 0.85),
        target_rows={"v7x": 256, "v6e": 1024, "v5e": 1024}.get(gen, 512),
        mxu_dim=128 if gen == "v5e" else 256,
        # only v7x has 2 TensorCores -> only there force >= 2 grid steps
        need_two_steps=(gen not in ("v5e", "v6e")),
        # bf16 EUP exp path exists on v6e/v7x, not on v5e
        exp_in_bf16=(gen in ("v6e", "v7x")),
    )


def _choose_block_b(B: int, S: int, *, target_rows: int, mxu_dim: int,
                    need_two_steps: bool) -> int:
    """Largest divisor of B with block_b*S <= target_rows, preferring M that is a
    multiple of the MXU dimension; optionally keep >= 2 grid steps (multi-TC)."""
    cands = [c for c in range(1, B + 1) if B % c == 0
             and (not need_two_steps or B == 1 or B // c >= 2)]
    fitting = [c for c in cands if c * S <= target_rows] or [min(cands)]
    aligned = [c for c in fitting if (c * S) % mxu_dim == 0]
    return max(aligned) if aligned else max(fitting)


# ------------------------------- wrapper -------------------------------------
def encoder_block(x, params, num_heads: int, block_b=None):
    """x: [B, S, D] float32.  params: PyTorch-equivalent layout (see init_params)."""
    B, S, D = x.shape
    assert D % num_heads == 0
    hd = D // num_heads
    F = params["w1"].shape[1]

    cfg = _tpu_config()
    if block_b is None:
        block_b = _choose_block_b(B, S, target_rows=cfg["target_rows"],
                                  mxu_dim=cfg["mxu_dim"],
                                  need_two_steps=cfg["need_two_steps"])
    assert B % block_b == 0, "block_b must divide the batch"
    grid_b = B // block_b

    # ---- host-side weight preconditioning ----------------------------------
    # (1) reorder packed QKV columns: per-head [q_h|k_h|v_h] -> [Q | K | V]
    #     (head-major inside each) so in-kernel slices are contiguous.
    perm = np.arange(3 * D).reshape(num_heads, 3, hd).transpose(1, 0, 2).reshape(-1)
    wqkv = params["wqkv"][:, perm]
    bqkv = params["bqkv"][:, perm]
    # (2) fold the 1/sqrt(head_dim) attention scale into the Q projection.
    col_scale = jnp.where(jnp.arange(3 * D) < D, 1.0 / math.sqrt(hd), 1.0)
    wqkv = wqkv * col_scale
    bqkv = bqkv * col_scale
    # (3) bf16 weights for the MXU (f32 accumulation inside the kernel);
    #     biases / LayerNorm parameters stay f32.
    wqkv_b = wqkv.astype(jnp.bfloat16)
    wo_b = params["wo"].astype(jnp.bfloat16)
    w1_b = params["w1"].astype(jnp.bfloat16)
    w2_b = params["w2"].astype(jnp.bfloat16)

    kernel = _make_encoder_kernel(num_heads, hd, block_b, S, D,
                                  exp_in_bf16=cfg["exp_in_bf16"])

    # Grid-invariant operands: whole array resident in VMEM, no double buffer.
    resident = pl.BlockSpec(memory_space=pltpu.MemorySpace.VMEM)
    act_spec = pl.BlockSpec((block_b, S, D), lambda b: (b, 0, 0))

    cost = pl.CostEstimate(
        flops=int(2 * B * S * D * (3 * D + D + 2 * F) + 4 * B * S * S * D),
        transcendentals=int(B * num_heads * S * S + 4 * B * S),
        bytes_accessed=int(2 * B * S * D * 4                       # x in + out (f32)
                           + (3 * D * D + D * D + 2 * D * F) * 2   # bf16 weights
                           + (3 * D + 6 * D + F) * 4),             # biases/LN (f32)
    )

    return pl.pallas_call(
        kernel,
        out_shape=jax.ShapeDtypeStruct((B, S, D), x.dtype),
        grid_spec=pltpu.PrefetchScalarGridSpec(
            num_scalar_prefetch=0,
            grid=(grid_b,),
            in_specs=[
                act_spec,                # x
                resident, resident,      # wqkv, bqkv
                resident, resident,      # wo, bo
                resident, resident,      # ln1 gamma/beta
                resident, resident,      # w1, b1
                resident, resident,      # w2, b2
                resident, resident,      # ln2 gamma/beta
            ],
            out_specs=act_spec,
            scratch_shapes=[
                pltpu.VMEM((block_b, 3 * D, S), jnp.bfloat16),  # transposed QKV
                pltpu.VMEM((block_b, D, S), jnp.float32),       # transposed attn out
            ]),
        compiler_params=pltpu.CompilerParams(
            dimension_semantics=("parallel",),
            vmem_limit_bytes=cfg["vmem_limit_bytes"]),
        cost_estimate=cost,
    )(x, wqkv_b, bqkv, wo_b, params["bo"], params["g1"], params["be1"],
      w1_b, params["b1"], w2_b, params["b2"], params["g2"], params["be2"])


# ----------------------- pure-JAX reference (f32) ---------------------------
def encoder_block_ref(x, params, num_heads):
    B, S, D = x.shape
    hd = D // num_heads

    def ln(v, g, b):
        mu = jnp.mean(v, axis=-1, keepdims=True)
        var = jnp.mean((v - mu) ** 2, axis=-1, keepdims=True)
        return (v - mu) / jnp.sqrt(var + 1e-5) * g + b

    qkv = x @ params["wqkv"] + params["bqkv"][0]
    qkv = qkv.reshape(B, S, num_heads, 3 * hd).transpose(0, 2, 1, 3)
    q, k, v = jnp.split(qkv, 3, axis=-1)
    logits = (q @ jnp.swapaxes(k, -2, -1)) / math.sqrt(hd)
    attn = jax.nn.softmax(logits, axis=-1)
    vals = (attn @ v).transpose(0, 2, 1, 3).reshape(B, S, D)
    attn_out = vals @ params["wo"] + params["bo"][0]
    y = ln(x + attn_out, params["g1"][0], params["be1"][0])
    h = jnp.maximum(y @ params["w1"] + params["b1"][0], 0.0)
    ff = h @ params["w2"] + params["b2"][0]
    return ln(y + ff, params["g2"][0], params["be2"][0])


# ----------------------- parameter init -------------------------------------
def init_params(key, D, F):
    def xavier(k, shape):
        fan_in, fan_out = shape
        bound = math.sqrt(6.0 / (fan_in + fan_out))
        return jax.random.uniform(k, shape, jnp.float32, -bound, bound)

    ks = jax.random.split(key, 4)
    return {
        # stored as [in, out] so the math is x @ W + b (PyTorch per-head QKV packing)
        "wqkv": xavier(ks[0], (D, 3 * D)),
        "bqkv": jnp.zeros((1, 3 * D), jnp.float32),
        "wo": xavier(ks[1], (D, D)),
        "bo": jnp.zeros((1, D), jnp.float32),
        "g1": jnp.ones((1, D), jnp.float32),
        "be1": jnp.zeros((1, D), jnp.float32),
        "w1": xavier(ks[2], (D, F)),
        "b1": jnp.zeros((1, F), jnp.float32),
        "w2": xavier(ks[3], (F, D)),
        "b2": jnp.zeros((1, D), jnp.float32),
        "g2": jnp.ones((1, D), jnp.float32),
        "be2": jnp.zeros((1, D), jnp.float32),
    }


if __name__ == "__main__":
    B, S, D = 2, 8, 32          # batch, seq_len, input_dim
    num_heads = 4
    dim_ff = 64

    key = jax.random.PRNGKey(0)
    kx, kp = jax.random.split(key)
    x = jax.random.normal(kx, (B, S, D), jnp.float32)
    params = init_params(kp, D, dim_ff)

    out = encoder_block(x, params, num_heads)
    out = jax.block_until_ready(out)

    ref = encoder_block_ref(x, params, num_heads)
    assert out.shape == (B, S, D)
    # bf16 matmul operands (f32 accumulation) => compare against the f32
    # reference with a correspondingly relaxed tolerance.
    max_err = float(jnp.max(jnp.abs(out - ref)))
    assert max_err < 5e-2, f"mismatch vs reference: max abs err {max_err}"

    print("KERNEL_OK")
</pallas_src>

<mosaic_0001>
module attributes {stable_mosaic.version = 11 : i64} {
  func.func @kernel(%arg0: i32, %arg1: memref<1x8x32xf32, #tpu.memory_space<vmem>>, %arg2: memref<32x96xbf16, #tpu.memory_space<vmem>>, %arg3: memref<1x96xf32, #tpu.memory_space<vmem>>, %arg4: memref<32x32xbf16, #tpu.memory_space<vmem>>, %arg5: memref<1x32xf32, #tpu.memory_space<vmem>>, %arg6: memref<1x32xf32, #tpu.memory_space<vmem>>, %arg7: memref<1x32xf32, #tpu.memory_space<vmem>>, %arg8: memref<32x64xbf16, #tpu.memory_space<vmem>>, %arg9: memref<1x64xf32, #tpu.memory_space<vmem>>, %arg10: memref<64x32xbf16, #tpu.memory_space<vmem>>, %arg11: memref<1x32xf32, #tpu.memory_space<vmem>>, %arg12: memref<1x32xf32, #tpu.memory_space<vmem>>, %arg13: memref<1x32xf32, #tpu.memory_space<vmem>>, %arg14: memref<1x8x32xf32, #tpu.memory_space<vmem>>, %arg15: memref<1x96x8xbf16, #tpu.memory_space<vmem>>, %arg16: memref<1x32x8xf32, #tpu.memory_space<vmem>>) attributes {dimension_semantics = [#tpu.dimension_semantics<parallel>], iteration_bounds = array<i64: 2>, scalar_prefetch = 0 : i64, scratch_operands = 2 : i64, tpu.core_type = #tpu.core_type<tc>, window_params = [{transform_indices = @transform_0, window_bounds = array<i64: 1, 8, 32>}, {pipeline_mode = #tpu.pipeline_mode<synchronous>, transform_indices = @transform_1, window_bounds = array<i64: 32, 96>}, {pipeline_mode = #tpu.pipeline_mode<synchronous>, transform_indices = @transform_2, window_bounds = array<i64: 1, 96>}, {pipeline_mode = #tpu.pipeline_mode<synchronous>, transform_indices = @transform_3, window_bounds = array<i64: 32, 32>}, {pipeline_mode = #tpu.pipeline_mode<synchronous>, transform_indices = @transform_4, window_bounds = array<i64: 1, 32>}, {pipeline_mode = #tpu.pipeline_mode<synchronous>, transform_indices = @transform_5, window_bounds = array<i64: 1, 32>}, {pipeline_mode = #tpu.pipeline_mode<synchronous>, transform_indices = @transform_6, window_bounds = array<i64: 1, 32>}, {pipeline_mode = #tpu.pipeline_mode<synchronous>, transform_indices = @transform_7, window_bounds = array<i64: 32, 64>}, {pipeline_mode = #tpu.pipeline_mode<synchronous>, transform_indices = @transform_8, window_bounds = array<i64: 1, 64>}, {pipeline_mode = #tpu.pipeline_mode<synchronous>, transform_indices = @transform_9, window_bounds = array<i64: 64, 32>}, {pipeline_mode = #tpu.pipeline_mode<synchronous>, transform_indices = @transform_10, window_bounds = array<i64: 1, 32>}, {pipeline_mode = #tpu.pipeline_mode<synchronous>, transform_indices = @transform_11, window_bounds = array<i64: 1, 32>}, {pipeline_mode = #tpu.pipeline_mode<synchronous>, transform_indices = @transform_12, window_bounds = array<i64: 1, 32>}, {transform_indices = @transform_13, window_bounds = array<i64: 1, 8, 32>}]} {
    %c0 = arith.constant 0 : index
    %c0_0 = arith.constant 0 : index
    %c0_1 = arith.constant 0 : index
    %0 = vector.load %arg1[%c0, %c0_0, %c0_1] : memref<1x8x32xf32, #tpu.memory_space<vmem>>, vector<1x8x32xf32>
    %1 = vector.shape_cast %0 : vector<1x8x32xf32> to vector<8x32xf32>
    %2 = arith.truncf %1 : vector<8x32xf32> to vector<8x32xbf16>
    %c0_2 = arith.constant 0 : index
    %c0_3 = arith.constant 0 : index
    %3 = vector.load %arg2[%c0_2, %c0_3] : memref<32x96xbf16, #tpu.memory_space<vmem>>, vector<32x96xbf16>
    %cst = arith.constant dense<0.000000e+00> : vector<8x96xf32>
    %4 = tpu.matmul %2, %3, %cst {dimension_numbers = #tpu.dot_dimension_numbers<[1], [0], [0], [1], [0, 0, 1, 1], [], []>} : vector<8x32xbf16>, vector<32x96xbf16>, vector<8x96xf32> -> vector<8x96xf32>
    %c0_4 = arith.constant 0 : index
    %c0_5 = arith.constant 0 : index
    %5 = vector.load %arg3[%c0_4, %c0_5] : memref<1x96xf32, #tpu.memory_space<vmem>>, vector<1x96xf32>
    %6 = vector.broadcast %5 : vector<1x96xf32> to vector<8x96xf32>
    %7 = arith.addf %4, %6 : vector<8x96xf32>
    %8 = vector.shape_cast %7 : vector<8x96xf32> to vector<1x8x96xf32>
    %9 = tpu.transpose %8, [0, 2, 1] : vector<1x8x96xf32> -> vector<1x96x8xf32>
    %10 = arith.truncf %9 : vector<1x96x8xf32> to vector<1x96x8xbf16>
    %c0_6 = arith.constant 0 : index
    %c0_7 = arith.constant 0 : index
    %c0_8 = arith.constant 0 : index
    %11 = vector.load %arg15[%c0_6, %c0_7, %c0_8] : memref<1x96x8xbf16, #tpu.memory_space<vmem>>, vector<1x96x8xbf16>
    tpu.vector_store %arg15[%c0_6, %c0_7, %c0_8], %10 {strides = array<i32>} : memref<1x96x8xbf16, #tpu.memory_space<vmem>>, vector<1x96x8xbf16>,
    %c0_i32 = arith.constant 0 : i32
    %c1_i32 = arith.constant 1 : i32
    %12 = arith.muli %c0_i32, %c1_i32 : i32
    %c0_i32_9 = arith.constant 0 : i32
    %13 = arith.addi %c0_i32_9, %12 : i32
    %14 = arith.index_cast %13 : i32 to index
    %c0_10 = arith.constant 0 : index
    %c0_11 = arith.constant 0 : index
    %15 = vector.load %arg15[%14, %c0_10, %c0_11] : memref<1x96x8xbf16, #tpu.memory_space<vmem>>, vector<1x96x8xbf16>
    %16 = vector.shape_cast %15 : vector<1x96x8xbf16> to vector<96x8xbf16>
    %17 = vector.extract_strided_slice %16 {offsets = [0, 0], sizes = [32, 8], strides = [1, 1]} : vector<96x8xbf16> to vector<32x8xbf16>
    %18 = vector.shape_cast %17 : vector<32x8xbf16> to vector<4x8x8xbf16>
    %19 = vector.extract_strided_slice %16 {offsets = [32, 0], sizes = [32, 8], strides = [1, 1]} : vector<96x8xbf16> to vector<32x8xbf16>
    %20 = vector.shape_cast %19 : vector<32x8xbf16> to vector<4x8x8xbf16>
    %21 = vector.extract_strided_slice %16 {offsets = [64, 0], sizes = [32, 8], strides = [1, 1]} : vector<96x8xbf16> to vector<32x8xbf16>
    %22 = vector.shape_cast %21 : vector<32x8xbf16> to vector<4x8x8xbf16>
    %23 = tpu.transpose %18, [0, 2, 1] : vector<4x8x8xbf16> -> vector<4x8x8xbf16>
    "tpu.trace_start"() <{level = 10 : i32, message = "hid,hdj->hij"}> : () -> ()
    %cst_12 = arith.constant dense<0.000000e+00> : vector<4x8x8xf32>
    %24 = tpu.matmul %23, %20, %cst_12 {dimension_numbers = #tpu.dot_dimension_numbers<[2], [1], [1], [2], [0, 0, 0, 1, 1, 2], [0], [0]>} : vector<4x8x8xbf16>, vector<4x8x8xbf16>, vector<4x8x8xf32> -> vector<4x8x8xf32>
    "tpu.trace_stop"() : () -> ()
    %cst_13 = arith.constant dense<0xFF800000> : vector<4x8xf32>
    %25 = vector.multi_reduction <maximumf>, %24, %cst_13 [2] : vector<4x8x8xf32> to vector<4x8xf32>
    %26 = vector.shape_cast %25 : vector<4x8xf32> to vector<4x8x1xf32>
    %27 = vector.broadcast %26 : vector<4x8x1xf32> to vector<4x8x8xf32>
    %28 = arith.subf %24, %27 : vector<4x8x8xf32>
    %29 = math.exp %28 : vector<4x8x8xf32>
    %cst_14 = arith.constant dense<0.000000e+00> : vector<4x8xf32>
    %30 = vector.multi_reduction <add>, %29, %cst_14 [2] : vector<4x8x8xf32> to vector<4x8xf32>
    %31 = vector.shape_cast %30 : vector<4x8xf32> to vector<4x8x1xf32>
    %32 = tpu.reciprocal %31 {approx = true} : vector<4x8x1xf32> -> vector<4x8x1xf32>
    %33 = vector.broadcast %32 : vector<4x8x1xf32> to vector<4x8x8xf32>
    %34 = arith.mulf %29, %33 : vector<4x8x8xf32>
    %35 = arith.truncf %34 : vector<4x8x8xf32> to vector<4x8x8xbf16>
    "tpu.trace_start"() <{level = 10 : i32, message = "hdj,hij->hdi"}> : () -> ()
    %cst_15 = arith.constant dense<0.000000e+00> : vector<4x8x8xf32>
    %36 = tpu.matmul %22, %35, %cst_15 {dimension_numbers = #tpu.dot_dimension_numbers<[2], [2], [1], [1], [0, 0, 0, 1, 1, 1], [0], [0]>} : vector<4x8x8xbf16>, vector<4x8x8xbf16>, vector<4x8x8xf32> -> vector<4x8x8xf32>
    "tpu.trace_stop"() : () -> ()
    %37 = vector.shape_cast %36 : vector<4x8x8xf32> to vector<32x8xf32>
    %38 = arith.index_cast %13 : i32 to index
    %c0_16 = arith.constant 0 : index
    %c0_17 = arith.constant 0 : index
    %39 = vector.load %arg16[%38, %c0_16, %c0_17] : memref<1x32x8xf32, #tpu.memory_space<vmem>>, vector<1x32x8xf32>
    %40 = vector.shape_cast %39 : vector<1x32x8xf32> to vector<32x8xf32>
    %41 = vector.shape_cast %37 : vector<32x8xf32> to vector<1x32x8xf32>
    tpu.vector_store %arg16[%38, %c0_16, %c0_17], %41 {strides = array<i32>} : memref<1x32x8xf32, #tpu.memory_space<vmem>>, vector<1x32x8xf32>,
    %c1_i32_18 = arith.constant 1 : i32
    %c0_19 = arith.constant 0 : index
    %c0_20 = arith.constant 0 : index
    %c0_21 = arith.constant 0 : index
    %42 = vector.load %arg16[%c0_19, %c0_20, %c0_21] : memref<1x32x8xf32, #tpu.memory_space<vmem>>, vector<1x32x8xf32>
    %43 = tpu.transpose %42, [0, 2, 1] : vector<1x32x8xf32> -> vector<1x8x32xf32>
    %44 = vector.shape_cast %43 : vector<1x8x32xf32> to vector<8x32xf32>
    %45 = arith.truncf %44 : vector<8x32xf32> to vector<8x32xbf16>
    %c0_22 = arith.constant 0 : index
    %c0_23 = arith.constant 0 : index
    %46 = vector.load %arg4[%c0_22, %c0_23] : memref<32x32xbf16, #tpu.memory_space<vmem>>, vector<32x32xbf16>
    %cst_24 = arith.constant dense<0.000000e+00> : vector<8x32xf32>
    %47 = tpu.matmul %45, %46, %cst_24 {dimension_numbers = #tpu.dot_dimension_numbers<[1], [0], [0], [1], [0, 0, 1, 1], [], []>} : vector<8x32xbf16>, vector<32x32xbf16>, vector<8x32xf32> -> vector<8x32xf32>
    %c0_25 = arith.constant 0 : index
    %c0_26 = arith.constant 0 : index
    %48 = vector.load %arg5[%c0_25, %c0_26] : memref<1x32xf32, #tpu.memory_space<vmem>>, vector<1x32xf32>
    %49 = vector.broadcast %48 : vector<1x32xf32> to vector<8x32xf32>
    %50 = arith.addf %47, %49 : vector<8x32xf32>
    %51 = arith.addf %1, %50 : vector<8x32xf32>
    %c0_27 = arith.constant 0 : index
    %c0_28 = arith.constant 0 : index
    %52 = vector.load %arg6[%c0_27, %c0_28] : memref<1x32xf32, #tpu.memory_space<vmem>>, vector<1x32xf32>
    %c0_29 = arith.constant 0 : index
    %c0_30 = arith.constant 0 : index
    %53 = vector.load %arg7[%c0_29, %c0_30] : memref<1x32xf32, #tpu.memory_space<vmem>>, vector<1x32xf32>
    %cst_31 = arith.constant dense<0.000000e+00> : vector<8xf32>
    %54 = vector.multi_reduction <add>, %51, %cst_31 [1] : vector<8x32xf32> to vector<8xf32>
    %55 = vector.shape_cast %54 : vector<8xf32> to vector<8x1xf32>
    %cst_32 = arith.constant 3.200000e+01 : f32
    %56 = vector.broadcast %cst_32 : f32 to vector<8x1xf32>
    %57 = arith.divf %55, %56 : vector<8x1xf32>
    %58 = vector.broadcast %57 : vector<8x1xf32> to vector<8x32xf32>
    %59 = arith.subf %51, %58 : vector<8x32xf32>
    %60 = arith.mulf %59, %59 : vector<8x32xf32>
    %cst_33 = arith.constant dense<0.000000e+00> : vector<8xf32>
    %61 = vector.multi_reduction <add>, %60, %cst_33 [1] : vector<8x32xf32> to vector<8xf32>
    %62 = vector.shape_cast %61 : vector<8xf32> to vector<8x1xf32>
    %cst_34 = arith.constant 3.200000e+01 : f32
    %63 = vector.broadcast %cst_34 : f32 to vector<8x1xf32>
    %64 = arith.divf %62, %63 : vector<8x1xf32>
    %65 = vector.broadcast %57 : vector<8x1xf32> to vector<8x32xf32>
    %66 = arith.subf %51, %65 : vector<8x32xf32>
    %cst_35 = arith.constant 9.99999974E-6 : f32
    %67 = vector.broadcast %cst_35 : f32 to vector<8x1xf32>
    %68 = arith.addf %64, %67 : vector<8x1xf32>
    %69 = math.rsqrt %68 : vector<8x1xf32>
    %70 = vector.broadcast %69 : vector<8x1xf32> to vector<8x32xf32>
    %71 = arith.mulf %66, %70 : vector<8x32xf32>
    %72 = vector.broadcast %52 : vector<1x32xf32> to vector<8x32xf32>
    %73 = arith.mulf %71, %72 : vector<8x32xf32>
    %74 = vector.broadcast %53 : vector<1x32xf32> to vector<8x32xf32>
    %75 = arith.addf %73, %74 : vector<8x32xf32>
    %76 = arith.truncf %75 : vector<8x32xf32> to vector<8x32xbf16>
    %c0_36 = arith.constant 0 : index
    %c0_37 = arith.constant 0 : index
    %77 = vector.load %arg8[%c0_36, %c0_37] : memref<32x64xbf16, #tpu.memory_space<vmem>>, vector<32x64xbf16>
    %cst_38 = arith.constant dense<0.000000e+00> : vector<8x64xf32>
    %78 = tpu.matmul %76, %77, %cst_38 {dimension_numbers = #tpu.dot_dimension_numbers<[1], [0], [0], [1], [0, 0, 1, 1], [], []>} : vector<8x32xbf16>, vector<32x64xbf16>, vector<8x64xf32> -> vector<8x64xf32>
    %c0_39 = arith.constant 0 : index
    %c0_40 = arith.constant 0 : index
    %79 = vector.load %arg9[%c0_39, %c0_40] : memref<1x64xf32, #tpu.memory_space<vmem>>, vector<1x64xf32>
    %80 = vector.broadcast %79 : vector<1x64xf32> to vector<8x64xf32>
    %81 = arith.addf %78, %80 : vector<8x64xf32>
    %cst_41 = arith.constant 0.000000e+00 : f32
    %82 = vector.broadcast %cst_41 : f32 to vector<8x64xf32>
    %83 = arith.maximumf %81, %82 : vector<8x64xf32>
    %84 = arith.truncf %83 : vector<8x64xf32> to vector<8x64xbf16>
    %c0_42 = arith.constant 0 : index
    %c0_43 = arith.constant 0 : index
    %85 = vector.load %arg10[%c0_42, %c0_43] : memref<64x32xbf16, #tpu.memory_space<vmem>>, vector<64x32xbf16>
    %cst_44 = arith.constant dense<0.000000e+00> : vector<8x32xf32>
    %86 = tpu.matmul %84, %85, %cst_44 {dimension_numbers = #tpu.dot_dimension_numbers<[1], [0], [0], [1], [0, 0, 1, 1], [], []>} : vector<8x64xbf16>, vector<64x32xbf16>, vector<8x32xf32> -> vector<8x32xf32>
    %c0_45 = arith.constant 0 : index
    %c0_46 = arith.constant 0 : index
    %87 = vector.load %arg11[%c0_45, %c0_46] : memref<1x32xf32, #tpu.memory_space<vmem>>, vector<1x32xf32>
    %88 = vector.broadcast %87 : vector<1x32xf32> to vector<8x32xf32>
    %89 = arith.addf %86, %88 : vector<8x32xf32>
    %90 = arith.addf %75, %89 : vector<8x32xf32>
    %c0_47 = arith.constant 0 : index
    %c0_48 = arith.constant 0 : index
    %91 = vector.load %arg12[%c0_47, %c0_48] : memref<1x32xf32, #tpu.memory_space<vmem>>, vector<1x32xf32>
    %c0_49 = arith.constant 0 : index
    %c0_50 = arith.constant 0 : index
    %92 = vector.load %arg13[%c0_49, %c0_50] : memref<1x32xf32, #tpu.memory_space<vmem>>, vector<1x32xf32>
    %cst_51 = arith.constant dense<0.000000e+00> : vector<8xf32>
    %93 = vector.multi_reduction <add>, %90, %cst_51 [1] : vector<8x32xf32> to vector<8xf32>
    %94 = vector.shape_cast %93 : vector<8xf32> to vector<8x1xf32>
    %cst_52 = arith.constant 3.200000e+01 : f32
    %95 = vector.broadcast %cst_52 : f32 to vector<8x1xf32>
    %96 = arith.divf %94, %95 : vector<8x1xf32>
    %97 = vector.broadcast %96 : vector<8x1xf32> to vector<8x32xf32>
    %98 = arith.subf %90, %97 : vector<8x32xf32>
    %99 = arith.mulf %98, %98 : vector<8x32xf32>
    %cst_53 = arith.constant dense<0.000000e+00> : vector<8xf32>
    %100 = vector.multi_reduction <add>, %99, %cst_53 [1] : vector<8x32xf32> to vector<8xf32>
    %101 = vector.shape_cast %100 : vector<8xf32> to vector<8x1xf32>
    %cst_54 = arith.constant 3.200000e+01 : f32
    %102 = vector.broadcast %cst_54 : f32 to vector<8x1xf32>
    %103 = arith.divf %101, %102 : vector<8x1xf32>
    %104 = vector.broadcast %96 : vector<8x1xf32> to vector<8x32xf32>
    %105 = arith.subf %90, %104 : vector<8x32xf32>
    %cst_55 = arith.constant 9.99999974E-6 : f32
    %106 = vector.broadcast %cst_55 : f32 to vector<8x1xf32>
    %107 = arith.addf %103, %106 : vector<8x1xf32>
    %108 = math.rsqrt %107 : vector<8x1xf32>
    %109 = vector.broadcast %108 : vector<8x1xf32> to vector<8x32xf32>
    %110 = arith.mulf %105, %109 : vector<8x32xf32>
    %111 = vector.broadcast %91 : vector<1x32xf32> to vector<8x32xf32>
    %112 = arith.mulf %110, %111 : vector<8x32xf32>
    %113 = vector.broadcast %92 : vector<1x32xf32> to vector<8x32xf32>
    %114 = arith.addf %112, %113 : vector<8x32xf32>
    %115 = vector.shape_cast %114 : vector<8x32xf32> to vector<1x8x32xf32>
    %c0_56 = arith.constant 0 : index
    %c0_57 = arith.constant 0 : index
    %c0_58 = arith.constant 0 : index
    %116 = vector.load %arg14[%c0_56, %c0_57, %c0_58] : memref<1x8x32xf32, #tpu.memory_space<vmem>>, vector<1x8x32xf32>
    tpu.vector_store %arg14[%c0_56, %c0_57, %c0_58], %115 {strides = array<i32>} : memref<1x8x32xf32, #tpu.memory_space<vmem>>, vector<1x8x32xf32>,
    return
  }
  func.func @transform_0(%arg0: i32) -> (i32, i32, i32) {
    %c0_i32 = arith.constant 0 : i32
    %c0_i32_0 = arith.constant 0 : i32
    %c0_i32_1 = arith.constant 0 : i32
    return %arg0, %c0_i32, %c0_i32_0 : i32, i32, i32
  }
  func.func @transform_1(%arg0: i32) -> (i32, i32) {
    %c0_i32 = arith.constant 0 : i32
    %c0_i32_0 = arith.constant 0 : i32
    %c0_i32_1 = arith.constant 0 : i32
    return %c0_i32, %c0_i32_0 : i32, i32
  }
  func.func @transform_2(%arg0: i32) -> (i32, i32) {
    %c0_i32 = arith.constant 0 : i32
    %c0_i32_0 = arith.constant 0 : i32
    %c0_i32_1 = arith.constant 0 : i32
    return %c0_i32, %c0_i32_0 : i32, i32
  }
  func.func @transform_3(%arg0: i32) -> (i32, i32) {
    %c0_i32 = arith.constant 0 : i32
    %c0_i32_0 = arith.constant 0 : i32
    %c0_i32_1 = arith.constant 0 : i32
    return %c0_i32, %c0_i32_0 : i32, i32
  }
  func.func @transform_4(%arg0: i32) -> (i32, i32) {
    %c0_i32 = arith.constant 0 : i32
    %c0_i32_0 = arith.constant 0 : i32
    %c0_i32_1 = arith.constant 0 : i32
    return %c0_i32, %c0_i32_0 : i32, i32
  }
  func.func @transform_5(%arg0: i32) -> (i32, i32) {
    %c0_i32 = arith.constant 0 : i32
    %c0_i32_0 = arith.constant 0 : i32
    %c0_i32_1 = arith.constant 0 : i32
    return %c0_i32, %c0_i32_0 : i32, i32
  }
  func.func @transform_6(%arg0: i32) -> (i32, i32) {
    %c0_i32 = arith.constant 0 : i32
    %c0_i32_0 = arith.constant 0 : i32
    %c0_i32_1 = arith.constant 0 : i32
    return %c0_i32, %c0_i32_0 : i32, i32
  }
  func.func @transform_7(%arg0: i32) -> (i32, i32) {
    %c0_i32 = arith.constant 0 : i32
    %c0_i32_0 = arith.constant 0 : i32
    %c0_i32_1 = arith.constant 0 : i32
    return %c0_i32, %c0_i32_0 : i32, i32
  }
  func.func @transform_8(%arg0: i32) -> (i32, i32) {
    %c0_i32 = arith.constant 0 : i32
    %c0_i32_0 = arith.constant 0 : i32
    %c0_i32_1 = arith.constant 0 : i32
    return %c0_i32, %c0_i32_0 : i32, i32
  }
  func.func @transform_9(%arg0: i32) -> (i32, i32) {
    %c0_i32 = arith.constant 0 : i32
    %c0_i32_0 = arith.constant 0 : i32
    %c0_i32_1 = arith.constant 0 : i32
    return %c0_i32, %c0_i32_0 : i32, i32
  }
  func.func @transform_10(%arg0: i32) -> (i32, i32) {
    %c0_i32 = arith.constant 0 : i32
    %c0_i32_0 = arith.constant 0 : i32
    %c0_i32_1 = arith.constant 0 : i32
    return %c0_i32, %c0_i32_0 : i32, i32
  }
  func.func @transform_11(%arg0: i32) -> (i32, i32) {
    %c0_i32 = arith.constant 0 : i32
    %c0_i32_0 = arith.constant 0 : i32
    %c0_i32_1 = arith.constant 0 : i32
    return %c0_i32, %c0_i32_0 : i32, i32
  }
  func.func @transform_12(%arg0: i32) -> (i32, i32) {
    %c0_i32 = arith.constant 0 : i32
    %c0_i32_0 = arith.constant 0 : i32
    %c0_i32_1 = arith.constant 0 : i32
    return %c0_i32, %c0_i32_0 : i32, i32
  }
  func.func @transform_13(%arg0: i32) -> (i32, i32, i32) {
    %c0_i32 = arith.constant 0 : i32
    %c0_i32_0 = arith.constant 0 : i32
    %c0_i32_1 = arith.constant 0 : i32
    return %arg0, %c0_i32, %c0_i32_0 : i32, i32, i32
  }
}

</mosaic_0001>

<llo_original>
// kernel: tpu_custom_call.1
$region0: #{tpu_custom_call.1}
  #allocation0 [shape = 'u32[]', space=smem, size = 0x4, offset = 0x4, fixed_abs, tag = 'smem constant byte address 0x4 - core index']
  #allocation1 [shape = 'u32[144,128]{1,0:T(1,128)}', space=vmem, size = 0x12000, scoped, tag = 'internal scratch']
  #allocation2 [shape = 'bf16[1,96,8]{2,1,0:T(8,128)(2,1)}', space=vmem, size = 0x6000, scoped, tag = 'scratch operand']
  #allocation3 [shape = 'f32[1,32,8]{2,1,0:T(8,128)}', space=vmem, size = 0x4000, scoped, tag = 'scratch operand']
  %s0 = inlined_call_operand.vmem [shape: f32[2,8,32], index: 0, kind: input, shape index: {}]
  %s1 = inlined_call_operand.vmem [shape: bf16[32,96], index: 1, kind: input, shape index: {}]
  %s2 = inlined_call_operand.hbm [shape: f32[1,96], index: 2, kind: input, shape index: {}]
  %s3 = inlined_call_operand.vmem [shape: bf16[32,32], index: 3, kind: input, shape index: {}]
  %s4 = inlined_call_operand.hbm [shape: f32[1,32], index: 4, kind: input, shape index: {}]
  %s5 = inlined_call_operand.hbm [shape: f32[1,32], index: 5, kind: input, shape index: {}]
  %s6 = inlined_call_operand.hbm [shape: f32[1,32], index: 6, kind: input, shape index: {}]
  %s7 = inlined_call_operand.hbm [shape: bf16[32,64], index: 7, kind: input, shape index: {}]
  %s8 = inlined_call_operand.hbm [shape: f32[1,64], index: 8, kind: input, shape index: {}]
  %s9 = inlined_call_operand.vmem [shape: bf16[64,32], index: 9, kind: input, shape index: {}]
  %s10 = inlined_call_operand.vmem [shape: f32[1,32], index: 10, kind: input, shape index: {}]
  %s11 = inlined_call_operand.vmem [shape: f32[1,32], index: 11, kind: input, shape index: {}]
  %s12 = inlined_call_operand.vmem [shape: f32[1,32], index: 12, kind: input, shape index: {}]
  %s13 = inlined_call_operand.hbm [shape: f32[2,8,32], index: 13, kind: output, shape index: {}]
  %s14 = sld [smem:[#allocation0]]
  $region109: #{tpu_custom_call.1} parent=0
    _
  %s16 = ssub.s32 1, %s14
  %s17 = scalar_select 0, %s16, %s14
  $region1: #{tpu_custom_call.1} parent=0
    #allocation4 [shape = 'u8[512]{0}', space=vmem, size = 0x400, scoped, tag = 'input window, operand 2, single buffered']
    #allocation5 [shape = 's32[2]{0}', space=sflag, size = 0x8, scoped, tag = 'scoped memory for tpu_custom_call.1']
    #allocation6 [shape = 's32[2]{0}', space=sflag, size = 0x8, scoped, tag = 'scoped memory for tpu_custom_call.1']
    #allocation7 [shape = 'u8[512]{0}', space=vmem, size = 0x400, scoped, tag = 'input window, operand 4, single buffered']
    #allocation8 [shape = 's32[1]{0}', space=sflag, size = 0x4, scoped, tag = 'scoped memory for tpu_custom_call.1']
    #allocation9 [shape = 'u8[512]{0}', space=vmem, size = 0x400, scoped, tag = 'input window, operand 5, single buffered']
    #allocation10 [shape = 'u8[512]{0}', space=vmem, size = 0x400, scoped, tag = 'input window, operand 6, single buffered']
    #allocation11 [shape = 's32[1]{0}', space=sflag, size = 0x4, scoped, tag = 'scoped memory for tpu_custom_call.1']
    #allocation12 [shape = 'u8[8192]{0}', space=vmem, size = 0x2000, scoped, tag = 'input window, operand 7, single buffered']
    #allocation13 [shape = 'u8[512]{0}', space=vmem, size = 0x400, scoped, tag = 'input window, operand 8, single buffered']
    #allocation14 [shape = 's32[1]{0}', space=sflag, size = 0x4, scoped, tag = 'scoped memory for tpu_custom_call.1']
    #allocation15 [shape = 'u8[8192]{0}', space=vmem, size = 0x2000, scoped, tag = 'output window, operand 0']
    %18 = vsyncpa [#allocation5], 0
    %19 = vsyncpa [#allocation8], 0
    %20 = vsyncpa [#allocation11], 0
    %21 = vsyncpa [#allocation14], 0
    %22 = vsyncpa [#allocation6], 0
    %s23 = scalar_lea.sflag [#allocation6], 1
    %24 = vsyncpa %s23, 0
    loop: start=0, step=1, limit=4
    $region2: #{tpu_custom_call.1} parent=1 // loop_pre_header
      _
    $region3: #{tpu_custom_call.1} parent=1 // loop_header
      %s26 = sphi 0, %s30
      %p27 = scmp.ge.s32.totalorder %s26, 4
      %s36 = sphi 0, %s38
      %s39 = sphi 0, %s36
      %s40 = sphi 0, %s39
      %s56 = sphi 0, %s40
      %s60 = sphi 0, %s60
      %s62 = sphi 0, %s60
      %s63 = sphi 0, %s62
      %s77 = sphi 0, %s63
      %s81 = sphi 0, %s81
      %s83 = sphi 0, %s81
      %s84 = sphi 0, %s83
      %s98 = sphi 0, %s84
      %s102 = sphi 0, %s102
      %s104 = sphi 0, %s102
      %s105 = sphi 0, %s104
      %s119 = sphi 0, %s105
      %s123 = sphi 0, %s123
      %s125 = sphi 0, %s123
      %s126 = sphi 0, %s125
      %s140 = sphi 0, %s126
      %s144 = sphi 0, %s144
      %s146 = sphi 0, %s144
      %s147 = sphi 0, %s146
      %s161 = sphi 0, %s147
      %s165 = sphi 0, %s165
      %s167 = sphi 0, %s165
      %s168 = sphi 0, %s167
      %s182 = sphi 0, %s168
      %s186 = sphi 0, %s186
      %s188 = sphi 0, %s186
      %s189 = sphi 0, %s188
      %s203 = sphi 0, %s189
      %s207 = sphi 0, %s207
      %s209 = sphi 0, %s207
      %s210 = sphi 0, %s209
      %s224 = sphi 0, %s210
      %s228 = sphi 0, %s228
      %s230 = sphi 0, %s228
      %s231 = sphi 0, %s230
      %s245 = sphi 0, %s231
      %s249 = sphi 0, %s249
      %s251 = sphi 0, %s249
      %s252 = sphi 0, %s251
      %s266 = sphi 0, %s252
      %s270 = sphi 0, %s270
      %s272 = sphi 0, %s270
      %s273 = sphi 0, %s272
      %s287 = sphi 0, %s273
      %s291 = sphi 0, %s291
      %s293 = sphi 0, %s291
      %s294 = sphi 0, %s293
      %s308 = sphi 0, %s294
      %s314 = sphi 0, %s316
      %s317 = sphi 0, %s314
      %s318 = sphi 0, %s317
      %s334 = sphi 0, %s318
    $region4: #{tpu_custom_call.1} parent=1 // loop_header_branch
      %29 = sbr.rel (%p27) target = $region8
    $region5: #{tpu_custom_call.1} parent=1 // loop_body
      %s31 = ssub.s32 %s26, 1
      %s32 = ssub.s32 %s26, 2
      %s33 = sadd.s32 %s26, 1
      %s34 = ssub.s32 %s26, %s33
      %p35 = scmp.eq.s32.totalorder %s34, 0
      %s37 = sadd.s32 %s36, 1
      %s38 = scalar_select %p35, %s36, %s37
      %p41 = pneg %p35
      %p42 = scmp.eq.s32.totalorder %s26, 1
      %p43 = por %p41, %p42
      %p44 = scmp.ne.s32.totalorder %s36, %s39
      %p45 = scmp.eq.s32.totalorder %s26, 0
      %p46 = por %p44, %p45
      %p47 = scmp.ne.s32.totalorder %s36, %s39
      %p48 = scmp.eq.s32.totalorder %s31, 1
      %p49 = por %p47, %p48
      %p50 = scmp.ne.s32.totalorder %s39, %s40
      %p51 = scmp.eq.s32.totalorder %s31, 0
      %p52 = por %p50, %p51
      %p53 = scmp.ne.s32.totalorder %s39, %s40
      %p54 = scmp.eq.s32.totalorder %s32, 1
      %p55 = por %p53, %p54
      %p57 = scmp.ne.s32.totalorder %s40, %s56
      %p58 = scmp.eq.s32.totalorder %s32, 0
      %p59 = por %p57, %p58
      %s61 = sadd.s32 %s60, 1
      %p64 = scmp.eq.s32.totalorder %s26, 1
      %p65 = scmp.ne.s32.totalorder %s60, %s62
      %p66 = scmp.eq.s32.totalorder %s26, 0
      %p67 = por %p65, %p66
      %p68 = scmp.ne.s32.totalorder %s60, %s62
      %p69 = scmp.eq.s32.totalorder %s31, 1
      %p70 = por %p68, %p69
      %p71 = scmp.ne.s32.totalorder %s62, %s63
      %p72 = scmp.eq.s32.totalorder %s31, 0
      %p73 = por %p71, %p72
      %p74 = scmp.ne.s32.totalorder %s62, %s63
      %p75 = scmp.eq.s32.totalorder %s32, 1
      %p76 = por %p74, %p75
      %p78 = scmp.ne.s32.totalorder %s63, %s77
      %p79 = scmp.eq.s32.totalorder %s32, 0
      %p80 = por %p78, %p79
      %s82 = sadd.s32 %s81, 1
      %p85 = scmp.eq.s32.totalorder %s26, 1
      %p86 = scmp.ne.s32.totalorder %s81, %s83
      %p87 = scmp.eq.s32.totalorder %s26, 0
      %p88 = por %p86, %p87
      %p89 = scmp.ne.s32.totalorder %s81, %s83
      %p90 = scmp.eq.s32.totalorder %s31, 1
      %p91 = por %p89, %p90
      %p92 = scmp.ne.s32.totalorder %s83, %s84
      %p93 = scmp.eq.s32.totalorder %s31, 0
      %p94 = por %p92, %p93
      %p95 = scmp.ne.s32.totalorder %s83, %s84
      %p96 = scmp.eq.s32.totalorder %s32, 1
      %p97 = por %p95, %p96
      %p99 = scmp.ne.s32.totalorder %s84, %s98
      %p100 = scmp.eq.s32.totalorder %s32, 0
      %p101 = por %p99, %p100
      %s103 = sadd.s32 %s102, 1
      %p106 = scmp.eq.s32.totalorder %s26, 1
      %p107 = scmp.ne.s32.totalorder %s102, %s104
      %p108 = scmp.eq.s32.totalorder %s26, 0
      %p109 = por %p107, %p108
      %p110 = scmp.ne.s32.totalorder %s102, %s104
      %p111 = scmp.eq.s32.totalorder %s31, 1
      %p112 = por %p110, %p111
      %p113 = scmp.ne.s32.totalorder %s104, %s105
      %p114 = scmp.eq.s32.totalorder %s31, 0
      %p115 = por %p113, %p114
      %p116 = scmp.ne.s32.totalorder %s104, %s105
      %p117 = scmp.eq.s32.totalorder %s32, 1
      %p118 = por %p116, %p117
      %p120 = scmp.ne.s32.totalorder %s105, %s119
      %p121 = scmp.eq.s32.totalorder %s32, 0
      %p122 = por %p120, %p121
      %s124 = sadd.s32 %s123, 1
      %p127 = scmp.eq.s32.totalorder %s26, 1
      %p128 = scmp.ne.s32.totalorder %s123, %s125
      %p129 = scmp.eq.s32.totalorder %s26, 0
      %p130 = por %p128, %p129
      %p131 = scmp.ne.s32.totalorder %s123, %s125
      %p132 = scmp.eq.s32.totalorder %s31, 1
      %p133 = por %p131, %p132
      %p134 = scmp.ne.s32.totalorder %s125, %s126
      %p135 = scmp.eq.s32.totalorder %s31, 0
      %p136 = por %p134, %p135
      %p137 = scmp.ne.s32.totalorder %s125, %s126
      %p138 = scmp.eq.s32.totalorder %s32, 1
      %p139 = por %p137, %p138
      %p141 = scmp.ne.s32.totalorder %s126, %s140
      %p142 = scmp.eq.s32.totalorder %s32, 0
      %p143 = por %p141, %p142
      %s145 = sadd.s32 %s144, 1
      %p148 = scmp.eq.s32.totalorder %s26, 1
      %p149 = scmp.ne.s32.totalorder %s144, %s146
      %p150 = scmp.eq.s32.totalorder %s26, 0
      %p151 = por %p149, %p150
      %p152 = scmp.ne.s32.totalorder %s144, %s146
      %p153 = scmp.eq.s32.totalorder %s31, 1
      %p154 = por %p152, %p153
      %p155 = scmp.ne.s32.totalorder %s146, %s147
      %p156 = scmp.eq.s32.totalorder %s31, 0
      %p157 = por %p155, %p156
      %p158 = scmp.ne.s32.totalorder %s146, %s147
      %p159 = scmp.eq.s32.totalorder %s32, 1
      %p160 = por %p158, %p159
      %p162 = scmp.ne.s32.totalorder %s147, %s161
      %p163 = scmp.eq.s32.totalorder %s32, 0
      %p164 = por %p162, %p163
      %s166 = sadd.s32 %s165, 1
      %p169 = scmp.eq.s32.totalorder %s26, 1
      %p170 = scmp.ne.s32.totalorder %s165, %s167
      %p171 = scmp.eq.s32.totalorder %s26, 0
      %p172 = por %p170, %p171
      %p173 = scmp.ne.s32.totalorder %s165, %s167
      %p174 = scmp.eq.s32.totalorder %s31, 1
      %p175 = por %p173, %p174
      %p176 = scmp.ne.s32.totalorder %s167, %s168
      %p177 = scmp.eq.s32.totalorder %s31, 0
      %p178 = por %p176, %p177
      %p179 = scmp.ne.s32.totalorder %s167, %s168
      %p180 = scmp.eq.s32.totalorder %s32, 1
      %p181 = por %p179, %p180
      %p183 = scmp.ne.s32.totalorder %s168, %s182
      %p184 = scmp.eq.s32.totalorder %s32, 0
      %p185 = por %p183, %p184
      %s187 = sadd.s32 %s186, 1
      %p190 = scmp.eq.s32.totalorder %s26, 1
      %p191 = scmp.ne.s32.totalorder %s186, %s188
      %p192 = scmp.eq.s32.totalorder %s26, 0
      %p193 = por %p191, %p192
      %p194 = scmp.ne.s32.totalorder %s186, %s188
      %p195 = scmp.eq.s32.totalorder %s31, 1
      %p196 = por %p194, %p195
      %p197 = scmp.ne.s32.totalorder %s188, %s189
      %p198 = scmp.eq.s32.totalorder %s31, 0
      %p199 = por %p197, %p198
      %p200 = scmp.ne.s32.totalorder %s188, %s189
      %p201 = scmp.eq.s32.totalorder %s32, 1
      %p202 = por %p200, %p201
      %p204 = scmp.ne.s32.totalorder %s189, %s203
      %p205 = scmp.eq.s32.totalorder %s32, 0
      %p206 = por %p204, %p205
      %s208 = sadd.s32 %s207, 1
      %p211 = scmp.eq.s32.totalorder %s26, 1
      %p212 = scmp.ne.s32.totalorder %s207, %s209
      %p213 = scmp.eq.s32.totalorder %s26, 0
      %p214 = por %p212, %p213
      %p215 = scmp.ne.s32.totalorder %s207, %s209
      %p216 = scmp.eq.s32.totalorder %s31, 1
      %p217 = por %p215, %p216
      %p218 = scmp.ne.s32.totalorder %s209, %s210
      %p219 = scmp.eq.s32.totalorder %s31, 0
      %p220 = por %p218, %p219
      %p221 = scmp.ne.s32.totalorder %s209, %s210
      %p222 = scmp.eq.s32.totalorder %s32, 1
      %p223 = por %p221, %p222
      %p225 = scmp.ne.s32.totalorder %s210, %s224
      %p226 = scmp.eq.s32.totalorder %s32, 0
      %p227 = por %p225, %p226
      %s229 = sadd.s32 %s228, 1
      %p232 = scmp.eq.s32.totalorder %s26, 1
      %p233 = scmp.ne.s32.totalorder %s228, %s230
      %p234 = scmp.eq.s32.totalorder %s26, 0
      %p235 = por %p233, %p234
      %p236 = scmp.ne.s32.totalorder %s228, %s230
      %p237 = scmp.eq.s32.totalorder %s31, 1
      %p238 = por %p236, %p237
      %p239 = scmp.ne.s32.totalorder %s230, %s231
      %p240 = scmp.eq.s32.totalorder %s31, 0
      %p241 = por %p239, %p240
      %p242 = scmp.ne.s32.totalorder %s230, %s231
      %p243 = scmp.eq.s32.totalorder %s32, 1
      %p244 = por %p242, %p243
      %p246 = scmp.ne.s32.totalorder %s231, %s245
      %p247 = scmp.eq.s32.totalorder %s32, 0
      %p248 = por %p246, %p247
      %s250 = sadd.s32 %s249, 1
      %p253 = scmp.eq.s32.totalorder %s26, 1
      %p254 = scmp.ne.s32.totalorder %s249, %s251
      %p255 = scmp.eq.s32.totalorder %s26, 0
      %p256 = por %p254, %p255
      %p257 = scmp.ne.s32.totalorder %s249, %s251
      %p258 = scmp.eq.s32.totalorder %s31, 1
      %p259 = por %p257, %p258
      %p260 = scmp.ne.s32.totalorder %s251, %s252
      %p261 = scmp.eq.s32.totalorder %s31, 0
      %p262 = por %p260, %p261
      %p263 = scmp.ne.s32.totalorder %s251, %s252
      %p264 = scmp.eq.s32.totalorder %s32, 1
      %p265 = por %p263, %p264
      %p267 = scmp.ne.s32.totalorder %s252, %s266
      %p268 = scmp.eq.s32.totalorder %s32, 0
      %p269 = por %p267, %p268
      %s271 = sadd.s32 %s270, 1
      %p274 = scmp.eq.s32.totalorder %s26, 1
      %p275 = scmp.ne.s32.totalorder %s270, %s272
      %p276 = scmp.eq.s32.totalorder %s26, 0
      %p277 = por %p275, %p276
      %p278 = scmp.ne.s32.totalorder %s270, %s272
      %p279 = scmp.eq.s32.totalorder %s31, 1
      %p280 = por %p278, %p279
      %p281 = scmp.ne.s32.totalorder %s272, %s273
      %p282 = scmp.eq.s32.totalorder %s31, 0
      %p283 = por %p281, %p282
      %p284 = scmp.ne.s32.totalorder %s272, %s273
      %p285 = scmp.eq.s32.totalorder %s32, 1
      %p286 = por %p284, %p285
      %p288 = scmp.ne.s32.totalorder %s273, %s287
      %p289 = scmp.eq.s32.totalorder %s32, 0
      %p290 = por %p288, %p289
      %s292 = sadd.s32 %s291, 1
      %p295 = scmp.eq.s32.totalorder %s26, 1
      %p296 = scmp.ne.s32.totalorder %s291, %s293
      %p297 = scmp.eq.s32.totalorder %s26, 0
      %p298 = por %p296, %p297
      %p299 = scmp.ne.s32.totalorder %s291, %s293
      %p300 = scmp.eq.s32.totalorder %s31, 1
      %p301 = por %p299, %p300
      %p302 = scmp.ne.s32.totalorder %s293, %s294
      %p303 = scmp.eq.s32.totalorder %s31, 0
      %p304 = por %p302, %p303
      %p305 = scmp.ne.s32.totalorder %s293, %s294
      %p306 = scmp.eq.s32.totalorder %s32, 1
      %p307 = por %p305, %p306
      %p309 = scmp.ne.s32.totalorder %s294, %s308
      %p310 = scmp.eq.s32.totalorder %s32, 0
      %p311 = por %p309, %p310
      %s312 = ssub.s32 %s26, %s33
      %p313 = scmp.eq.s32.totalorder %s312, 0
      %s315 = sadd.s32 %s314, 1
      %s316 = scalar_select %p313, %s314, %s315
      %p319 = pneg %p313
      %p320 = scmp.eq.s32.totalorder %s26, 1
      %p321 = por %p319, %p320
      %p322 = scmp.ne.s32.totalorder %s314, %s317
      %p323 = scmp.eq.s32.totalorder %s26, 0
      %p324 = por %p322, %p323
      %p325 = scmp.ne.s32.totalorder %s314, %s317
      %p326 = scmp.eq.s32.totalorder %s31, 1
      %p327 = por %p325, %p326
      %p328 = scmp.ne.s32.totalorder %s317, %s318
      %p329 = scmp.eq.s32.totalorder %s31, 0
      %p330 = por %p328, %p329
      %p331 = scmp.ne.s32.totalorder %s317, %s318
      %p332 = scmp.eq.s32.totalorder %s32, 1
      %p333 = por %p331, %p332
      %p335 = scmp.ne.s32.totalorder %s318, %s334
      %p336 = scmp.eq.s32.totalorder %s32, 0
      %p337 = por %p335, %p336
      %p338 = scmp.le.s32.totalorder 1, %s26
      %p339 = scmp.lt.s32.totalorder %s26, 3
      %p340 = pnand %p338, %p339
      %p341 = pneg %p340
      // Predicated region
      $region9: #{tpu_custom_call.1} parent=5 // pred_check
        _
      $region10: #{tpu_custom_call.1} parent=5 // pred_check_branch
        %343 = sbr.rel (%p340) target = $region12
      $region11: #{tpu_custom_call.1} parent=5 // pred_region
        %s344 = ssub.s32 %s26, 1
        // Predicated region
        $region13: #{tpu_custom_call.1} parent=11 // pred_check
          %p345 = pneg %p73
        $region14: #{tpu_custom_call.1} parent=11 // pred_check_branch
          %347 = sbr.rel (%p345) target = $region16
        $region15: #{tpu_custom_call.1} parent=11 // pred_region
          _
        $region16: #{tpu_custom_call.1} parent=11 // pred_fallthru
          _
        // Predicated region
        $region17: #{tpu_custom_call.1} parent=11 // pred_check
          %p348 = pneg %p94
        $region18: #{tpu_custom_call.1} parent=11 // pred_check_branch
          %350 = sbr.rel (%p348) target = $region20
        $region19: #{tpu_custom_call.1} parent=11 // pred_region
          %s352 = ssub.s32 16, 16
          %353 = vsyncadd [#allocation5], %s352
          %s355 = sshll.u32 [#allocation4], 4
          %s356 = int_to_ptr.vmem [resolvable:$true] %s355
          %358 = dma.hbm_to_vmem [thread:$0]  %s2, 16, %s356, [#allocation5]
        $region20: #{tpu_custom_call.1} parent=11 // pred_fallthru
          _
        // Predicated region
        $region21: #{tpu_custom_call.1} parent=11 // pred_check
          %p359 = pneg %p115
        $region22: #{tpu_custom_call.1} parent=11 // pred_check_branch
          %361 = sbr.rel (%p359) target = $region24
        $region23: #{tpu_custom_call.1} parent=11 // pred_region
          _
        $region24: #{tpu_custom_call.1} parent=11 // pred_fallthru
          _
        // Predicated region
        $region25: #{tpu_custom_call.1} parent=11 // pred_check
          %p362 = pneg %p136
        $region26: #{tpu_custom_call.1} parent=11 // pred_check_branch
          %364 = sbr.rel (%p362) target = $region28
        $region27: #{tpu_custom_call.1} parent=11 // pred_region
          %s366 = ssub.s32 16, 16
          %367 = vsyncadd [#allocation8], %s366
          %s369 = sshll.u32 [#allocation7], 4
          %s370 = int_to_ptr.vmem [resolvable:$true] %s369
          %372 = dma.hbm_to_vmem [thread:$0]  %s4, 16, %s370, [#allocation8]
        $region28: #{tpu_custom_call.1} parent=11 // pred_fallthru
          _
        // Predicated region
        $region29: #{tpu_custom_call.1} parent=11 // pred_check
          %p373 = pneg %p157
        $region30: #{tpu_custom_call.1} parent=11 // pred_check_branch
          %375 = sbr.rel (%p373) target = $region32
        $region31: #{tpu_custom_call.1} parent=11 // pred_region
          %s377 = ssub.s32 16, 16
          %378 = vsyncadd [#allocation8], %s377
          %s380 = sshll.u32 [#allocation9], 4
          %s381 = int_to_ptr.vmem [resolvable:$true] %s380
          %383 = dma.hbm_to_vmem [thread:$0]  %s5, 16, %s381, [#allocation8]
        $region32: #{tpu_custom_call.1} parent=11 // pred_fallthru
          _
        // Predicated region
        $region33: #{tpu_custom_call.1} parent=11 // pred_check
          %p384 = pneg %p178
        $region34: #{tpu_custom_call.1} parent=11 // pred_check_branch
          %386 = sbr.rel (%p384) target = $region36
        $region35: #{tpu_custom_call.1} parent=11 // pred_region
          %s388 = ssub.s32 16, 16
          %389 = vsyncadd [#allocation11], %s388
          %s391 = sshll.u32 [#allocation10], 4
          %s392 = int_to_ptr.vmem [resolvable:$true] %s391
          %394 = dma.hbm_to_vmem [thread:$0]  %s6, 16, %s392, [#allocation11]
        $region36: #{tpu_custom_call.1} parent=11 // pred_fallthru
          _
        // Predicated region
        $region37: #{tpu_custom_call.1} parent=11 // pred_check
          %p395 = pneg %p199
        $region38: #{tpu_custom_call.1} parent=11 // pred_check_branch
          %397 = sbr.rel (%p395) target = $region40
        $region39: #{tpu_custom_call.1} parent=11 // pred_region
          %s399 = ssub.s32 256, 256
          %400 = vsyncadd [#allocation11], %s399
          %s401 = sshll.u32 [#allocation12], 4
          %s402 = int_to_ptr.vmem [resolvable:$true] %s401
          %407 = dma.hbm_to_vmem [thread:$0]  %s7, 256, %s402, [#allocation11], 64, 64, 4
        $region40: #{tpu_custom_call.1} parent=11 // pred_fallthru
          _
        // Predicated region
        $region41: #{tpu_custom_call.1} parent=11 // pred_check
          %p408 = pneg %p220
        $region42: #{tpu_custom_call.1} parent=11 // pred_check_branch
          %410 = sbr.rel (%p408) target = $region44
        $region43: #{tpu_custom_call.1} parent=11 // pred_region
          %s412 = ssub.s32 16, 16
          %413 = vsyncadd [#allocation14], %s412
          %s415 = sshll.u32 [#allocation13], 4
          %s416 = int_to_ptr.vmem [resolvable:$true] %s415
          %418 = dma.hbm_to_vmem [thread:$0]  %s8, 16, %s416, [#allocation14]
        $region44: #{tpu_custom_call.1} parent=11 // pred_fallthru
          _
        // Predicated region
        $region45: #{tpu_custom_call.1} parent=11 // pred_check
          %p419 = pneg %p241
        $region46: #{tpu_custom_call.1} parent=11 // pred_check_branch
          %421 = sbr.rel (%p419) target = $region48
        $region47: #{tpu_custom_call.1} parent=11 // pred_region
          _
        $region48: #{tpu_custom_call.1} parent=11 // pred_fallthru
          _
        // Predicated region
        $region49: #{tpu_custom_call.1} parent=11 // pred_check
          %p422 = pneg %p262
        $region50: #{tpu_custom_call.1} parent=11 // pred_check_branch
          %424 = sbr.rel (%p422) target = $region52
        $region51: #{tpu_custom_call.1} parent=11 // pred_region
          _
        $region52: #{tpu_custom_call.1} parent=11 // pred_fallthru
          _
        // Predicated region
        $region53: #{tpu_custom_call.1} parent=11 // pred_check
          %p425 = pneg %p283
        $region54: #{tpu_custom_call.1} parent=11 // pred_check_branch
          %427 = sbr.rel (%p425) target = $region56
        $region55: #{tpu_custom_call.1} parent=11 // pred_region
          _
        $region56: #{tpu_custom_call.1} parent=11 // pred_fallthru
          _
        // Predicated region
        $region57: #{tpu_custom_call.1} parent=11 // pred_check
          %p428 = pneg %p304
        $region58: #{tpu_custom_call.1} parent=11 // pred_check_branch
          %430 = sbr.rel (%p428) target = $region60
        $region59: #{tpu_custom_call.1} parent=11 // pred_region
          _
        $region60: #{tpu_custom_call.1} parent=11 // pred_fallthru
          _
      $region12: #{tpu_custom_call.1} parent=5 // pred_fallthru
        _
      %p431 = scmp.lt.s32.totalorder %s26, 2
      // Predicated region
      $region61: #{tpu_custom_call.1} parent=5 // pred_check
        %p432 = pneg %p431
      $region62: #{tpu_custom_call.1} parent=5 // pred_check_branch
        %434 = sbr.rel (%p432) target = $region64
      $region63: #{tpu_custom_call.1} parent=5 // pred_region
        // Predicated region
        $region65: #{tpu_custom_call.1} parent=63 // pred_check
          %p435 = pneg %p46
        $region66: #{tpu_custom_call.1} parent=63 // pred_check_branch
          %437 = sbr.rel (%p435) target = $region68
        $region67: #{tpu_custom_call.1} parent=63 // pred_region
          %p438 = scmp.lt.s32.totalorder %s26, 1
          %s439 = scalar_select %p438, %s26, 1
          %s440 = smul.addr %s439, 8
          %s441 = scalar_lea.vmem %s0, %s440
        $region68: #{tpu_custom_call.1} parent=63 // pred_fallthru
          _
      $region64: #{tpu_custom_call.1} parent=5 // pred_fallthru
        _
      %p442 = scmp.le.s32.totalorder 1, %s26
      %p443 = scmp.lt.s32.totalorder %s26, 3
      %p444 = pnand %p442, %p443
      %p445 = pneg %p444
      // Predicated region
      $region69: #{tpu_custom_call.1} parent=5 // pred_check
        _
      $region70: #{tpu_custom_call.1} parent=5 // pred_check_branch
        %447 = sbr.rel (%p444) target = $region72
      $region71: #{tpu_custom_call.1} parent=5 // pred_region
        %s448 = ssub.s32 %s26, 1
        // Predicated region
        $region73: #{tpu_custom_call.1} parent=71 // pred_check
          %p449 = pneg %p94
        $region74: #{tpu_custom_call.1} parent=71 // pred_check_branch
          %451 = sbr.rel (%p449) target = $region76
        $region75: #{tpu_custom_call.1} parent=71 // pred_region
          %452 = dma.done [#allocation5], 16
        $region76: #{tpu_custom_call.1} parent=71 // pred_fallthru
          _
        // Predicated region
        $region77: #{tpu_custom_call.1} parent=71 // pred_check
          %p453 = pneg %p136
        $region78: #{tpu_custom_call.1} parent=71 // pred_check_branch
          %455 = sbr.rel (%p453) target = $region80
        $region79: #{tpu_custom_call.1} parent=71 // pred_region
          %456 = dma.done [#allocation8], 16
        $region80: #{tpu_custom_call.1} parent=71 // pred_fallthru
          _
        // Predicated region
        $region81: #{tpu_custom_call.1} parent=71 // pred_check
          %p457 = pneg %p157
        $region82: #{tpu_custom_call.1} parent=71 // pred_check_branch
          %459 = sbr.rel (%p457) target = $region84
        $region83: #{tpu_custom_call.1} parent=71 // pred_region
          %460 = dma.done [#allocation8], 16
        $region84: #{tpu_custom_call.1} parent=71 // pred_fallthru
          _
        // Predicated region
        $region85: #{tpu_custom_call.1} parent=71 // pred_check
          %p461 = pneg %p178
        $region86: #{tpu_custom_call.1} parent=71 // pred_check_branch
          %463 = sbr.rel (%p461) target = $region88
        $region87: #{tpu_custom_call.1} parent=71 // pred_region
          %464 = dma.done [#allocation11], 16
        $region88: #{tpu_custom_call.1} parent=71 // pred_fallthru
          _
        // Predicated region
        $region89: #{tpu_custom_call.1} parent=71 // pred_check
          %p465 = pneg %p199
        $region90: #{tpu_custom_call.1} parent=71 // pred_check_branch
          %467 = sbr.rel (%p465) target = $region92
        $region91: #{tpu_custom_call.1} parent=71 // pred_region
          %468 = dma.done [#allocation11], 256
        $region92: #{tpu_custom_call.1} parent=71 // pred_fallthru
          _
        // Predicated region
        $region93: #{tpu_custom_call.1} parent=71 // pred_check
          %p469 = pneg %p220
        $region94: #{tpu_custom_call.1} parent=71 // pred_check_branch
          %471 = sbr.rel (%p469) target = $region96
        $region95: #{tpu_custom_call.1} parent=71 // pred_region
          %472 = dma.done [#allocation14], 16
        $region96: #{tpu_custom_call.1} parent=71 // pred_fallthru
          _
        %p473 = scmp.lt.s32.totalorder %s31, 1
        %s474 = scalar_select %p473, %s31, 1
        %s475 = smul.addr %s474, 8
        %s476 = scalar_lea.vmem %s0, %s475
        %p477 = pneg %p52
        %p478 = pneg %p49
        %p479 = pneg %p73
        %p480 = pneg %p70
        %p481 = pneg %p94
        %p482 = pneg %p91
        %p483 = pneg %p115
        %p484 = pneg %p112
        %p485 = pneg %p136
        %p486 = pneg %p133
        %p487 = pneg %p157
        %p488 = pneg %p154
        %p489 = pneg %p178
        %p490 = pneg %p175
        %p491 = pneg %p199
        %p492 = pneg %p196
        %p493 = pneg %p220
        %p494 = pneg %p217
        %p495 = pneg %p241
        %p496 = pneg %p238
        %p497 = pneg %p262
        %p498 = pneg %p259
        %p499 = pneg %p283
        %p500 = pneg %p280
        %p501 = pneg %p304
        %p502 = pneg %p301
        %p503 = pneg %p330
        %p504 = pneg %p327
        %s505 = sand.u32 %s317, 1
        %s506 = scalar_lea.sflag [#allocation6], %s505
        %s507 = sand.u32 %s317, 1
        %s508 = smul.addr %s507, 8
        %s509 = scalar_lea.vmem [#allocation15], %s508
        %p510 = scmp.lt.s32.totalorder %s31, 1
        %s511 = scalar_select %p510, %s31, 1
        %s512 = smul.addr %s511, 8
        %s513 = scalar_lea.vmem %s0, %s512
        %v515 = vld [vmem:[%s513] sm:$0xff]
        %v516 = vpack.c.bf16 %v515, %v515
        %v517 = vld [vmem:[%s1] sm:$0xf]
        %v518 = vld [vmem:[%s1 + $0x4] sm:$0xf]
        %v519 = vld [vmem:[%s1 + $0x8] sm:$0xf]
        %v520 = vld [vmem:[%s1 + $0xc] sm:$0xf]
        %v521 = vld [vmem:[#allocation4] sm:$0x1]
        %v523 = vlaneseq
        %v524 = vshrl.u32 %v523, 7
        %v525 = vsub.s32 0, %v524
        %v526 = vrot.slane %v521, %v525
        %v532 = vunpack.c.l.b16 %v517
        %v533 = vunpack.c.l.b16 %v518
        %v534 = vunpack.c.l.b16 %v519
        %v535 = vunpack.c.l.b16 %v520
        %v536 = vpack.c.b16 %v533, %v532
        %v537 = vpack.c.b16 %v535, %v534
        %vm540 = vcmask 261120
        %v542 = vsel %vm540, %v516, 0
        %544 = vmatprep.subr.bf16.mxu0 0
        %545 = vmatpush1.bf16.msra.mxu0 0
        %546 = vmatprep.subr.bf16.mxu0 0
        %547 = vmatpush1.bf16.msra.mxu0 0
        %548 = vmatprep.subr.bf16.mxu0 0
        %549 = vmatpush1.bf16.msra.mxu0 0
        %550 = vmatprep.subr.bf16.mxu0 0
        %551 = vmatpush1.bf16.msra.mxu0 0
        %552 = vmatprep.subr.bf16.mxu0 0
        %553 = vmatpush1.bf16.msra.mxu0 0
        %554 = vmatprep.subr.bf16.mxu0 0
        %555 = vmatpush1.bf16.msra.mxu0 0
        %556 = vmatprep.subr.bf16.mxu0 0
        %557 = vmatpush1.bf16.msra.mxu0 %v537
        %558 = vmatprep.subr.bf16.mxu0 0
        %559 = vmatpush1.bf16.msra.mxu0 %v536
        %560 = vmatprep.subr.bf16.mxu0 0
        %561 = vmatpush2.bf16.msra.mxu0 0
        %562 = vmatprep.subr.bf16.mxu0 0
        %563 = vmatpush2.bf16.msra.mxu0 0
        %564 = vmatprep.subr.bf16.mxu0 0
        %565 = vmatpush2.bf16.msra.mxu0 0
        %566 = vmatprep.subr.bf16.mxu0 0
        %567 = vmatpush2.bf16.msra.mxu0 0
        %568 = vmatprep.subr.bf16.mxu0 0
        %569 = vmatpush2.bf16.msra.mxu0 0
        %570 = vmatprep.subr.bf16.mxu0 0
        %571 = vmatpush2.bf16.msra.mxu0 0
        %572 = vmatprep.subr.bf16.mxu0 0
        %573 = vmatpush2.bf16.msra.mxu0 0
        %574 = vmatprep.subr.bf16.mxu0 0
        %575 = vmatpush2.bf16.msra.mxu0 0
        %576 = vmatprep.mubr.bf16.mxu0 0
        %577 = vmatmul.mubr.bf16.gmra.mxu0 %v542
        %v578 = vpop.f32.mrf.mxu0
        %v579 = vadd.f32 %v526, %v578
        %v580 = vpop.f32.mrf.mxu0
        %v581 = vpop.f32.mrf.mxu0
        %v582 = vpop.f32.mrf.mxu0
        %583 = vdwg.mxu0
        %584 = vxpose.xlu0.b32.start [1/16] %v579, 128
        %585 = vxpose.xlu0.b32.cont [2/16] 0.0, 128
        %586 = vxpose.xlu0.b32.cont [3/16] 0.0, 128
        %587 = vxpose.xlu0.b32.cont [4/16] 0.0, 128
        %588 = vxpose.xlu0.b32.cont [5/16] 0.0, 128
        %589 = vxpose.xlu0.b32.cont [6/16] 0.0, 128
        %590 = vxpose.xlu0.b32.cont [7/16] 0.0, 128
        %591 = vxpose.xlu0.b32.cont [8/16] 0.0, 128
        %592 = vxpose.xlu0.b32.cont [9/16] 0.0, 128
        %593 = vxpose.xlu0.b32.cont [10/16] 0.0, 128
        %594 = vxpose.xlu0.b32.cont [11/16] 0.0, 128
        %595 = vxpose.xlu0.b32.cont [12/16] 0.0, 128
        %596 = vxpose.xlu0.b32.cont [13/16] 0.0, 128
        %597 = vxpose.xlu0.b32.cont [14/16] 0.0, 128
        %598 = vxpose.xlu0.b32.cont [15/16] 0.0, 128
        %599 = vxpose.xlu0.b32.end [16/16] 0.0, 128
        %v600 = vpop.trf.xlu0
        %v601 = vpop.trf.xlu0
        %v602 = vpop.trf.xlu0
        %v603 = vpop.trf.xlu0
        %v604 = vpop.trf.xlu0
        %v605 = vpop.trf.xlu0
        %v606 = vpop.trf.xlu0
        %v607 = vpop.trf.xlu0
        %v608 = vpop.trf.xlu0
        %v609 = vpop.trf.xlu0
        %v610 = vpop.trf.xlu0
        %v611 = vpop.trf.xlu0
        %v612 = vpop.trf.xlu0
        %v613 = vpop.trf.xlu0
        %v614 = vpop.trf.xlu0
        %v615 = vpop.trf.xlu0
        %v616 = vpack.c.bf16 %v601, %v600
        %v617 = vpack.c.bf16 %v603, %v602
        %v618 = vpack.c.bf16 %v605, %v604
        %v619 = vpack.c.bf16 %v607, %v606
        %v620 = vpack.c.bf16 %v609, %v608
        %v621 = vpack.c.bf16 %v611, %v610
        %v628 = vunpack.c.l.b16 %v616
        %v629 = vunpack.c.h.b16 %v616
        %v630 = vunpack.c.l.b16 %v617
        %v631 = vunpack.c.h.b16 %v617
        %v632 = vunpack.c.l.b16 %v618
        %v633 = vunpack.c.h.b16 %v618
        %v634 = vunpack.c.l.b16 %v619
        %v635 = vunpack.c.h.b16 %v619
        %v636 = vunpack.c.l.b16 %v620
        %v637 = vunpack.c.h.b16 %v620
        %v638 = vunpack.c.l.b16 %v621
        %v639 = vunpack.c.h.b16 %v621
        %v640 = vpack.c.b16 %v628, %v628
        %v641 = vpack.c.b16 %v629, %v629
        %v642 = vpack.c.b16 %v630, %v630
        %v643 = vpack.c.b16 %v631, %v631
        %v644 = vpack.c.b16 %v632, %v632
        %v645 = vpack.c.b16 %v633, %v633
        %v646 = vpack.c.b16 %v634, %v634
        %v647 = vpack.c.b16 %v635, %v635
        %v648 = vpack.c.b16 %v636, %v636
        %v649 = vpack.c.b16 %v637, %v637
        %v650 = vpack.c.b16 %v638, %v638
        %v651 = vpack.c.b16 %v639, %v639
        %vm664 = vcmask 60416
        %665 = vst.msk [vmem:[#allocation2] sm:$0xf] %vm664, %v640
        %666 = vst.msk [vmem:[#allocation2 + $0x4] sm:$0xf] %vm664, %v641
        %667 = vst.msk [vmem:[#allocation2 + $0x8] sm:$0xf] %vm664, %v642
        %668 = vst.msk [vmem:[#allocation2 + $0xc] sm:$0xf] %vm664, %v643
        %669 = vst.msk [vmem:[#allocation2 + $0x10] sm:$0xf] %vm664, %v644
        %670 = vst.msk [vmem:[#allocation2 + $0x14] sm:$0xf] %vm664, %v645
        %671 = vst.msk [vmem:[#allocation2 + $0x18] sm:$0xf] %vm664, %v646
        %672 = vst.msk [vmem:[#allocation2 + $0x1c] sm:$0xf] %vm664, %v647
        %673 = vst.msk [vmem:[#allocation2 + $0x20] sm:$0xf] %vm664, %v648
        %674 = vst.msk [vmem:[#allocation2 + $0x24] sm:$0xf] %vm664, %v649
        %675 = vst.msk [vmem:[#allocation2 + $0x28] sm:$0xf] %vm664, %v650
        %676 = vst.msk [vmem:[#allocation2 + $0x2c] sm:$0xf] %vm664, %v651
        %v677 = vld [vmem:[#allocation2] sm:$0xf]
        %v678 = vld [vmem:[#allocation2 + $0x4] sm:$0xf]
        %v679 = vld [vmem:[#allocation2 + $0x8] sm:$0xf]
        %v680 = vld [vmem:[#allocation2 + $0xc] sm:$0xf]
        %v681 = vld [vmem:[#allocation2 + $0x10] sm:$0xf]
        %v682 = vld [vmem:[#allocation2 + $0x14] sm:$0xf]
        %v683 = vld [vmem:[#allocation2 + $0x18] sm:$0xf]
        %v684 = vld [vmem:[#allocation2 + $0x1c] sm:$0xf]
        %v685 = vld [vmem:[#allocation2 + $0x20] sm:$0xf]
        %v686 = vld [vmem:[#allocation2 + $0x24] sm:$0xf]
        %v687 = vld [vmem:[#allocation2 + $0x28] sm:$0xf]
        %v688 = vld [vmem:[#allocation2 + $0x2c] sm:$0xf]
        %689 = vxpose.xlu0.c.b16.start [1/8] %v677, 128
        %690 = vxpose.xlu0.c.b16.cont [2/8] 0, 128
        %691 = vxpose.xlu0.c.b16.cont [3/8] 0, 128
        %692 = vxpose.xlu0.c.b16.cont [4/8] 0, 128
        %693 = vxpose.xlu0.c.b16.cont [5/8] 0, 128
        %694 = vxpose.xlu0.c.b16.cont [6/8] 0, 128
        %695 = vxpose.xlu0.c.b16.cont [7/8] 0, 128
        %696 = vxpose.xlu0.c.b16.end [8/8] 0, 128
        %v697 = vpop.trf.xlu0
        %v698 = vpop.trf.xlu0
        %v699 = vpop.trf.xlu0
        %v700 = vpop.trf.xlu0
        %v701 = vpop.trf.xlu0
        %v702 = vpop.trf.xlu0
        %v703 = vpop.trf.xlu0
        %v704 = vpop.trf.xlu0
        %705 = vxpose.xlu0.c.b16.start [1/8] %v678, 128
        %706 = vxpose.xlu0.c.b16.cont [2/8] 0, 128
        %707 = vxpose.xlu0.c.b16.cont [3/8] 0, 128
        %708 = vxpose.xlu0.c.b16.cont [4/8] 0, 128
        %709 = vxpose.xlu0.c.b16.cont [5/8] 0, 128
        %710 = vxpose.xlu0.c.b16.cont [6/8] 0, 128
        %711 = vxpose.xlu0.c.b16.cont [7/8] 0, 128
        %712 = vxpose.xlu0.c.b16.end [8/8] 0, 128
        %v713 = vpop.trf.xlu0
        %v714 = vpop.trf.xlu0
        %v715 = vpop.trf.xlu0
        %v716 = vpop.trf.xlu0
        %v717 = vpop.trf.xlu0
        %v718 = vpop.trf.xlu0
        %v719 = vpop.trf.xlu0
        %v720 = vpop.trf.xlu0
        %721 = vxpose.xlu0.c.b16.start [1/8] %v679, 128
        %722 = vxpose.xlu0.c.b16.cont [2/8] 0, 128
        %723 = vxpose.xlu0.c.b16.cont [3/8] 0, 128
        %724 = vxpose.xlu0.c.b16.cont [4/8] 0, 128
        %725 = vxpose.xlu0.c.b16.cont [5/8] 0, 128
        %726 = vxpose.xlu0.c.b16.cont [6/8] 0, 128
        %727 = vxpose.xlu0.c.b16.cont [7/8] 0, 128
        %728 = vxpose.xlu0.c.b16.end [8/8] 0, 128
        %v729 = vpop.trf.xlu0
        %v730 = vpop.trf.xlu0
        %v731 = vpop.trf.xlu0
        %v732 = vpop.trf.xlu0
        %v733 = vpop.trf.xlu0
        %v734 = vpop.trf.xlu0
        %v735 = vpop.trf.xlu0
        %v736 = vpop.trf.xlu0
        %737 = vxpose.xlu0.c.b16.start [1/8] %v680, 128
        %738 = vxpose.xlu0.c.b16.cont [2/8] 0, 128
        %739 = vxpose.xlu0.c.b16.cont [3/8] 0, 128
        %740 = vxpose.xlu0.c.b16.cont [4/8] 0, 128
        %741 = vxpose.xlu0.c.b16.cont [5/8] 0, 128
        %742 = vxpose.xlu0.c.b16.cont [6/8] 0, 128
        %743 = vxpose.xlu0.c.b16.cont [7/8] 0, 128
        %744 = vxpose.xlu0.c.b16.end [8/8] 0, 128
        %v745 = vpop.trf.xlu0
        %v746 = vpop.trf.xlu0
        %v747 = vpop.trf.xlu0
        %v748 = vpop.trf.xlu0
        %v749 = vpop.trf.xlu0
        %v750 = vpop.trf.xlu0
        %v751 = vpop.trf.xlu0
        %v752 = vpop.trf.xlu0
        %vm753 = vcmask 64512
        %v755 = vsel %vm753, %v697, 0
        %vm757 = vcmask 1043456
        %v759 = vsel %vm757, %v681, 0
        %761 = vmatprep.subr.bf16.mxu0 0
        %762 = vmatpush1.bf16.msra.mxu0 0
        %763 = vmatprep.subr.bf16.mxu0 0
        %764 = vmatpush1.bf16.msra.mxu0 0
        %765 = vmatprep.subr.bf16.mxu0 0
        %766 = vmatpush1.bf16.msra.mxu0 0
        %767 = vmatprep.subr.bf16.mxu0 0
        %768 = vmatpush1.bf16.msra.mxu0 0
        %769 = vmatprep.subr.bf16.mxu0 0
        %770 = vmatpush1.bf16.msra.mxu0 0
        %771 = vmatprep.subr.bf16.mxu0 0
        %772 = vmatpush1.bf16.msra.mxu0 0
        %773 = vmatprep.subr.bf16.mxu0 0
        %774 = vmatpush1.bf16.msra.mxu0 0
        %775 = vmatprep.subr.bf16.mxu0 0
        %776 = vmatpush1.bf16.msra.mxu0 %v759
        %777 = vmatprep.subr.bf16.mxu0 0
        %778 = vmatpush2.bf16.msra.mxu0 0
        %779 = vmatprep.subr.bf16.mxu0 0
        %780 = vmatpush2.bf16.msra.mxu0 0
        %781 = vmatprep.subr.bf16.mxu0 0
        %782 = vmatpush2.bf16.msra.mxu0 0
        %783 = vmatprep.subr.bf16.mxu0 0
        %784 = vmatpush2.bf16.msra.mxu0 0
        %785 = vmatprep.subr.bf16.mxu0 0
        %786 = vmatpush2.bf16.msra.mxu0 0
        %787 = vmatprep.subr.bf16.mxu0 0
        %788 = vmatpush2.bf16.msra.mxu0 0
        %789 = vmatprep.subr.bf16.mxu0 0
        %790 = vmatpush2.bf16.msra.mxu0 0
        %791 = vmatprep.subr.bf16.mxu0 0
        %792 = vmatpush2.bf16.msra.mxu0 0
        %793 = vmatprep.mubr.bf16.mxu0 0
        %794 = vmatmul.mubr.bf16.gmra.mxu0 %v755
        %v795 = vpop.f32.mrf.mxu0
        %v796 = vadd.f32 0.0, %v795
        %v797 = vpop.f32.mrf.mxu0
        %v798 = vpop.f32.mrf.mxu0
        %v799 = vpop.f32.mrf.mxu0
        %800 = vdwg.mxu0
        %v802 = vsel %vm753, %v713, 0
        %v805 = vsel %vm757, %v682, 0
        %807 = vmatprep.subr.bf16.mxu0 0
        %808 = vmatpush1.bf16.msra.mxu0 0
        %809 = vmatprep.subr.bf16.mxu0 0
        %810 = vmatpush1.bf16.msra.mxu0 0
        %811 = vmatprep.subr.bf16.mxu0 0
        %812 = vmatpush1.bf16.msra.mxu0 0
        %813 = vmatprep.subr.bf16.mxu0 0
        %814 = vmatpush1.bf16.msra.mxu0 0
        %815 = vmatprep.subr.bf16.mxu0 0
        %816 = vmatpush1.bf16.msra.mxu0 0
        %817 = vmatprep.subr.bf16.mxu0 0
        %818 = vmatpush1.bf16.msra.mxu0 0
        %819 = vmatprep.subr.bf16.mxu0 0
        %820 = vmatpush1.bf16.msra.mxu0 0
        %821 = vmatprep.subr.bf16.mxu0 0
        %822 = vmatpush1.bf16.msra.mxu0 %v805
        %823 = vmatprep.subr.bf16.mxu0 0
        %824 = vmatpush2.bf16.msra.mxu0 0
        %825 = vmatprep.subr.bf16.mxu0 0
        %826 = vmatpush2.bf16.msra.mxu0 0
        %827 = vmatprep.subr.bf16.mxu0 0
        %828 = vmatpush2.bf16.msra.mxu0 0
        %829 = vmatprep.subr.bf16.mxu0 0
        %830 = vmatpush2.bf16.msra.mxu0 0
        %831 = vmatprep.subr.bf16.mxu0 0
        %832 = vmatpush2.bf16.msra.mxu0 0
        %833 = vmatprep.subr.bf16.mxu0 0
        %834 = vmatpush2.bf16.msra.mxu0 0
        %835 = vmatprep.subr.bf16.mxu0 0
        %836 = vmatpush2.bf16.msra.mxu0 0
        %837 = vmatprep.subr.bf16.mxu0 0
        %838 = vmatpush2.bf16.msra.mxu0 0
        %839 = vmatprep.mubr.bf16.mxu0 0
        %840 = vmatmul.mubr.bf16.gmra.mxu0 %v802
        %v841 = vpop.f32.mrf.mxu0
        %v842 = vadd.f32 0.0, %v841
        %v843 = vpop.f32.mrf.mxu0
        %v844 = vpop.f32.mrf.mxu0
        %v845 = vpop.f32.mrf.mxu0
        %846 = vdwg.mxu0
        %v848 = vsel %vm753, %v729, 0
        %v851 = vsel %vm757, %v683, 0
        %853 = vmatprep.subr.bf16.mxu0 0
        %854 = vmatpush1.bf16.msra.mxu0 0
        %855 = vmatprep.subr.bf16.mxu0 0
        %856 = vmatpush1.bf16.msra.mxu0 0
        %857 = vmatprep.subr.bf16.mxu0 0
        %858 = vmatpush1.bf16.msra.mxu0 0
        %859 = vmatprep.subr.bf16.mxu0 0
        %860 = vmatpush1.bf16.msra.mxu0 0
        %861 = vmatprep.subr.bf16.mxu0 0
        %862 = vmatpush1.bf16.msra.mxu0 0
        %863 = vmatprep.subr.bf16.mxu0 0
        %864 = vmatpush1.bf16.msra.mxu0 0
        %865 = vmatprep.subr.bf16.mxu0 0
        %866 = vmatpush1.bf16.msra.mxu0 0
        %867 = vmatprep.subr.bf16.mxu0 0
        %868 = vmatpush1.bf16.msra.mxu0 %v851
        %869 = vmatprep.subr.bf16.mxu0 0
        %870 = vmatpush2.bf16.msra.mxu0 0
        %871 = vmatprep.subr.bf16.mxu0 0
        %872 = vmatpush2.bf16.msra.mxu0 0
        %873 = vmatprep.subr.bf16.mxu0 0
        %874 = vmatpush2.bf16.msra.mxu0 0
        %875 = vmatprep.subr.bf16.mxu0 0
        %876 = vmatpush2.bf16.msra.mxu0 0
        %877 = vmatprep.subr.bf16.mxu0 0
        %878 = vmatpush2.bf16.msra.mxu0 0
        %879 = vmatprep.subr.bf16.mxu0 0
        %880 = vmatpush2.bf16.msra.mxu0 0
        %881 = vmatprep.subr.bf16.mxu0 0
        %882 = vmatpush2.bf16.msra.mxu0 0
        %883 = vmatprep.subr.bf16.mxu0 0
        %884 = vmatpush2.bf16.msra.mxu0 0
        %885 = vmatprep.mubr.bf16.mxu0 0
        %886 = vmatmul.mubr.bf16.gmra.mxu0 %v848
        %v887 = vpop.f32.mrf.mxu0
        %v888 = vadd.f32 0.0, %v887
        %v889 = vpop.f32.mrf.mxu0
        %v890 = vpop.f32.mrf.mxu0
        %v891 = vpop.f32.mrf.mxu0
        %892 = vdwg.mxu0
        %v894 = vsel %vm753, %v745, 0
        %v897 = vsel %vm757, %v684, 0
        %899 = vmatprep.subr.bf16.mxu0 0
        %900 = vmatpush1.bf16.msra.mxu0 0
        %901 = vmatprep.subr.bf16.mxu0 0
        %902 = vmatpush1.bf16.msra.mxu0 0
        %903 = vmatprep.subr.bf16.mxu0 0
        %904 = vmatpush1.bf16.msra.mxu0 0
        %905 = vmatprep.subr.bf16.mxu0 0
        %906 = vmatpush1.bf16.msra.mxu0 0
        %907 = vmatprep.subr.bf16.mxu0 0
        %908 = vmatpush1.bf16.msra.mxu0 0
        %909 = vmatprep.subr.bf16.mxu0 0
        %910 = vmatpush1.bf16.msra.mxu0 0
        %911 = vmatprep.subr.bf16.mxu0 0
        %912 = vmatpush1.bf16.msra.mxu0 0
        %913 = vmatprep.subr.bf16.mxu0 0
        %914 = vmatpush1.bf16.msra.mxu0 %v897
        %915 = vmatprep.subr.bf16.mxu0 0
        %916 = vmatpush2.bf16.msra.mxu0 0
        %917 = vmatprep.subr.bf16.mxu0 0
        %918 = vmatpush2.bf16.msra.mxu0 0
        %919 = vmatprep.subr.bf16.mxu0 0
        %920 = vmatpush2.bf16.msra.mxu0 0
        %921 = vmatprep.subr.bf16.mxu0 0
        %922 = vmatpush2.bf16.msra.mxu0 0
        %923 = vmatprep.subr.bf16.mxu0 0
        %924 = vmatpush2.bf16.msra.mxu0 0
        %925 = vmatprep.subr.bf16.mxu0 0
        %926 = vmatpush2.bf16.msra.mxu0 0
        %927 = vmatprep.subr.bf16.mxu0 0
        %928 = vmatpush2.bf16.msra.mxu0 0
        %929 = vmatprep.subr.bf16.mxu0 0
        %930 = vmatpush2.bf16.msra.mxu0 0
        %931 = vmatprep.mubr.bf16.mxu0 0
        %932 = vmatmul.mubr.bf16.gmra.mxu0 %v894
        %v933 = vpop.f32.mrf.mxu0
        %v934 = vadd.f32 0.0, %v933
        %v935 = vpop.f32.mrf.mxu0
        %v936 = vpop.f32.mrf.mxu0
        %v937 = vpop.f32.mrf.mxu0
        %938 = vdwg.mxu0
        %v939 = vsel %vm753, %v796, -inf
        %940 = vmax.xlane.f32.xlu0 %v939
        %v941 = vpop.xlane.xlu0 %940
        %v942 = vsel %vm753, %v842, -inf
        %943 = vmax.xlane.f32.xlu0 %v942
        %v944 = vpop.xlane.xlu0 %943
        %v945 = vsel %vm753, %v888, -inf
        %946 = vmax.xlane.f32.xlu0 %v945
        %v947 = vpop.xlane.xlu0 %946
        %v948 = vsel %vm753, %v934, -inf
        %949 = vmax.xlane.f32.xlu0 %v948
        %v950 = vpop.xlane.xlu0 %949
        %v951 = vsub.f32 %v796, %v941
        %v952 = vsub.f32 %v842, %v944
        %v953 = vsub.f32 %v888, %v947
        %v954 = vsub.f32 %v934, %v950
        %v955 = vmul.f32 %v951, 1.442695
        %v956 = vpow.pop %v955
        %v957 = vmul.f32 %v952, 1.442695
        %v958 = vpow.pop %v957
        %v959 = vmul.f32 %v953, 1.442695
        %v960 = vpow.pop %v959
        %v961 = vmul.f32 %v954, 1.442695
        %v962 = vpow.pop %v961
        %v963 = vsel %vm753, %v956, 0.0
        %964 = vadd.xlane.f32.xlu0 %v963
        %v965 = vpop.xlane.xlu0 %964
        %v966 = vsel %vm753, %v958, 0.0
        %967 = vadd.xlane.f32.xlu0 %v966
        %v968 = vpop.xlane.xlu0 %967
        %v969 = vsel %vm753, %v960, 0.0
        %970 = vadd.xlane.f32.xlu0 %v969
        %v971 = vpop.xlane.xlu0 %970
        %v972 = vsel %vm753, %v962, 0.0
        %973 = vadd.xlane.f32.xlu0 %v972
        %v974 = vpop.xlane.xlu0 %973
        %v975 = vrcp.pop %v965
        %v976 = vrcp.pop %v968
        %v977 = vrcp.pop %v971
        %v978 = vrcp.pop %v974
        %v979 = vmul.f32 %v956, %v975
        %v980 = vmul.f32 %v958, %v976
        %v981 = vmul.f32 %v960, %v977
        %v982 = vmul.f32 %v962, %v978
        %v983 = vpack.c.bf16 %v979, %v979
        %v984 = vpack.c.bf16 %v980, %v980
        %v985 = vpack.c.bf16 %v981, %v981
        %v986 = vpack.c.bf16 %v982, %v982
        %v988 = vsel %vm753, %v685, 0
        %v991 = vsel %vm753, %v983, 0
        %993 = vmatprep.subr.bf16.mxu0 0
        %994 = vmatpush1.bf16.xpose.msra.mxu0 0
        %995 = vmatprep.subr.bf16.mxu0 0
        %996 = vmatpush1.bf16.xpose.msra.mxu0 0
        %997 = vmatprep.subr.bf16.mxu0 0
        %998 = vmatpush1.bf16.xpose.msra.mxu0 0
        %999 = vmatprep.subr.bf16.mxu0 0
        %1000 = vmatpush1.bf16.xpose.msra.mxu0 0
        %1001 = vmatprep.subr.bf16.mxu0 0
        %1002 = vmatpush1.bf16.xpose.msra.mxu0 0
        %1003 = vmatprep.subr.bf16.mxu0 0
        %1004 = vmatpush1.bf16.xpose.msra.mxu0 0
        %1005 = vmatprep.subr.bf16.mxu0 0
        %1006 = vmatpush1.bf16.xpose.msra.mxu0 0
        %1007 = vmatprep.subr.bf16.mxu0 0
        %1008 = vmatpush1.bf16.xpose.msra.mxu0 %v991
        %1009 = vmatprep.subr.bf16.mxu0 0
        %1010 = vmatpush2.bf16.xpose.msra.mxu0 0
        %1011 = vmatprep.subr.bf16.mxu0 0
        %1012 = vmatpush2.bf16.xpose.msra.mxu0 0
        %1013 = vmatprep.subr.bf16.mxu0 0
        %1014 = vmatpush2.bf16.xpose.msra.mxu0 0
        %1015 = vmatprep.subr.bf16.mxu0 0
        %1016 = vmatpush2.bf16.xpose.msra.mxu0 0
        %1017 = vmatprep.subr.bf16.mxu0 0
        %1018 = vmatpush2.bf16.xpose.msra.mxu0 0
        %1019 = vmatprep.subr.bf16.mxu0 0
        %1020 = vmatpush2.bf16.xpose.msra.mxu0 0
        %1021 = vmatprep.subr.bf16.mxu0 0
        %1022 = vmatpush2.bf16.xpose.msra.mxu0 0
        %1023 = vmatprep.subr.bf16.mxu0 0
        %1024 = vmatpush2.bf16.xpose.msra.mxu0 0
        %1025 = vmatprep.mubr.bf16.mxu0 0
        %1026 = vmatmul.mubr.bf16.gmra.mxu0 %v988
        %v1027 = vpop.f32.mrf.mxu0
        %v1028 = vadd.f32 0.0, %v1027
        %v1029 = vpop.f32.mrf.mxu0
        %v1030 = vpop.f32.mrf.mxu0
        %v1031 = vpop.f32.mrf.mxu0
        %1032 = vdwg.mxu0
        %v1034 = vsel %vm753, %v686, 0
        %v1037 = vsel %vm753, %v984, 0
        %1039 = vmatprep.subr.bf16.mxu0 0
        %1040 = vmatpush1.bf16.xpose.msra.mxu0 0
        %1041 = vmatprep.subr.bf16.mxu0 0
        %1042 = vmatpush1.bf16.xpose.msra.mxu0 0
        %1043 = vmatprep.subr.bf16.mxu0 0
        %1044 = vmatpush1.bf16.xpose.msra.mxu0 0
        %1045 = vmatprep.subr.bf16.mxu0 0
        %1046 = vmatpush1.bf16.xpose.msra.mxu0 0
        %1047 = vmatprep.subr.bf16.mxu0 0
        %1048 = vmatpush1.bf16.xpose.msra.mxu0 0
        %1049 = vmatprep.subr.bf16.mxu0 0
        %1050 = vmatpush1.bf16.xpose.msra.mxu0 0
        %1051 = vmatprep.subr.bf16.mxu0 0
        %1052 = vmatpush1.bf16.xpose.msra.mxu0 0
        %1053 = vmatprep.subr.bf16.mxu0 0
        %1054 = vmatpush1.bf16.xpose.msra.mxu0 %v1037
        %1055 = vmatprep.subr.bf16.mxu0 0
        %1056 = vmatpush2.bf16.xpose.msra.mxu0 0
        %1057 = vmatprep.subr.bf16.mxu0 0
        %1058 = vmatpush2.bf16.xpose.msra.mxu0 0
        %1059 = vmatprep.subr.bf16.mxu0 0
        %1060 = vmatpush2.bf16.xpose.msra.mxu0 0
        %1061 = vmatprep.subr.bf16.mxu0 0
        %1062 = vmatpush2.bf16.xpose.msra.mxu0 0
        %1063 = vmatprep.subr.bf16.mxu0 0
        %1064 = vmatpush2.bf16.xpose.msra.mxu0 0
        %1065 = vmatprep.subr.bf16.mxu0 0
        %1066 = vmatpush2.bf16.xpose.msra.mxu0 0
        %1067 = vmatprep.subr.bf16.mxu0 0
        %1068 = vmatpush2.bf16.xpose.msra.mxu0 0
        %1069 = vmatprep.subr.bf16.mxu0 0
        %1070 = vmatpush2.bf16.xpose.msra.mxu0 0
        %1071 = vmatprep.mubr.bf16.mxu0 0
        %1072 = vmatmul.mubr.bf16.gmra.mxu0 %v1034
        %v1073 = vpop.f32.mrf.mxu0
        %v1074 = vadd.f32 0.0, %v1073
        %v1075 = vpop.f32.mrf.mxu0
        %v1076 = vpop.f32.mrf.mxu0
        %v1077 = vpop.f32.mrf.mxu0
        %1078 = vdwg.mxu0
        %v1080 = vsel %vm753, %v687, 0
        %v1083 = vsel %vm753, %v985, 0
        %1085 = vmatprep.subr.bf16.mxu0 0
        %1086 = vmatpush1.bf16.xpose.msra.mxu0 0
        %1087 = vmatprep.subr.bf16.mxu0 0
        %1088 = vmatpush1.bf16.xpose.msra.mxu0 0
        %1089 = vmatprep.subr.bf16.mxu0 0
        %1090 = vmatpush1.bf16.xpose.msra.mxu0 0
        %1091 = vmatprep.subr.bf16.mxu0 0
        %1092 = vmatpush1.bf16.xpose.msra.mxu0 0
        %1093 = vmatprep.subr.bf16.mxu0 0
        %1094 = vmatpush1.bf16.xpose.msra.mxu0 0
        %1095 = vmatprep.subr.bf16.mxu0 0
        %1096 = vmatpush1.bf16.xpose.msra.mxu0 0
        %1097 = vmatprep.subr.bf16.mxu0 0
        %1098 = vmatpush1.bf16.xpose.msra.mxu0 0
        %1099 = vmatprep.subr.bf16.mxu0 0
        %1100 = vmatpush1.bf16.xpose.msra.mxu0 %v1083
        %1101 = vmatprep.subr.bf16.mxu0 0
        %1102 = vmatpush2.bf16.xpose.msra.mxu0 0
        %1103 = vmatprep.subr.bf16.mxu0 0
        %1104 = vmatpush2.bf16.xpose.msra.mxu0 0
        %1105 = vmatprep.subr.bf16.mxu0 0
        %1106 = vmatpush2.bf16.xpose.msra.mxu0 0
        %1107 = vmatprep.subr.bf16.mxu0 0
        %1108 = vmatpush2.bf16.xpose.msra.mxu0 0
        %1109 = vmatprep.subr.bf16.mxu0 0
        %1110 = vmatpush2.bf16.xpose.msra.mxu0 0
        %1111 = vmatprep.subr.bf16.mxu0 0
        %1112 = vmatpush2.bf16.xpose.msra.mxu0 0
        %1113 = vmatprep.subr.bf16.mxu0 0
        %1114 = vmatpush2.bf16.xpose.msra.mxu0 0
        %1115 = vmatprep.subr.bf16.mxu0 0
        %1116 = vmatpush2.bf16.xpose.msra.mxu0 0
        %1117 = vmatprep.mubr.bf16.mxu0 0
        %1118 = vmatmul.mubr.bf16.gmra.mxu0 %v1080
        %v1119 = vpop.f32.mrf.mxu0
        %v1120 = vadd.f32 0.0, %v1119
        %v1121 = vpop.f32.mrf.mxu0
        %v1122 = vpop.f32.mrf.mxu0
        %v1123 = vpop.f32.mrf.mxu0
        %1124 = vdwg.mxu0
        %v1126 = vsel %vm753, %v688, 0
        %v1129 = vsel %vm753, %v986, 0
        %1131 = vmatprep.subr.bf16.mxu0 0
        %1132 = vmatpush1.bf16.xpose.msra.mxu0 0
        %1133 = vmatprep.subr.bf16.mxu0 0
        %1134 = vmatpush1.bf16.xpose.msra.mxu0 0
        %1135 = vmatprep.subr.bf16.mxu0 0
        %1136 = vmatpush1.bf16.xpose.msra.mxu0 0
        %1137 = vmatprep.subr.bf16.mxu0 0
        %1138 = vmatpush1.bf16.xpose.msra.mxu0 0
        %1139 = vmatprep.subr.bf16.mxu0 0
        %1140 = vmatpush1.bf16.xpose.msra.mxu0 0
        %1141 = vmatprep.subr.bf16.mxu0 0
        %1142 = vmatpush1.bf16.xpose.msra.mxu0 0
        %1143 = vmatprep.subr.bf16.mxu0 0
        %1144 = vmatpush1.bf16.xpose.msra.mxu0 0
        %1145 = vmatprep.subr.bf16.mxu0 0
        %1146 = vmatpush1.bf16.xpose.msra.mxu0 %v1129
        %1147 = vmatprep.subr.bf16.mxu0 0
        %1148 = vmatpush2.bf16.xpose.msra.mxu0 0
        %1149 = vmatprep.subr.bf16.mxu0 0
        %1150 = vmatpush2.bf16.xpose.msra.mxu0 0
        %1151 = vmatprep.subr.bf16.mxu0 0
        %1152 = vmatpush2.bf16.xpose.msra.mxu0 0
        %1153 = vmatprep.subr.bf16.mxu0 0
        %1154 = vmatpush2.bf16.xpose.msra.mxu0 0
        %1155 = vmatprep.subr.bf16.mxu0 0
        %1156 = vmatpush2.bf16.xpose.msra.mxu0 0
        %1157 = vmatprep.subr.bf16.mxu0 0
        %1158 = vmatpush2.bf16.xpose.msra.mxu0 0
        %1159 = vmatprep.subr.bf16.mxu0 0
        %1160 = vmatpush2.bf16.xpose.msra.mxu0 0
        %1161 = vmatprep.subr.bf16.mxu0 0
        %1162 = vmatpush2.bf16.xpose.msra.mxu0 0
        %1163 = vmatprep.mubr.bf16.mxu0 0
        %1164 = vmatmul.mubr.bf16.gmra.mxu0 %v1126
        %v1165 = vpop.f32.mrf.mxu0
        %v1166 = vadd.f32 0.0, %v1165
        %v1167 = vpop.f32.mrf.mxu0
        %v1168 = vpop.f32.mrf.mxu0
        %v1169 = vpop.f32.mrf.mxu0
        %1170 = vdwg.mxu0
        %1171 = vst.msk [vmem:[#allocation3] sm:$0xff] %vm753, %v1028
        %1172 = vst.msk [vmem:[#allocation3 + $0x8] sm:$0xff] %vm753, %v1074
        %1173 = vst.msk [vmem:[#allocation3 + $0x10] sm:$0xff] %vm753, %v1120
        %1174 = vst.msk [vmem:[#allocation3 + $0x18] sm:$0xff] %vm753, %v1166
        %v1175 = vld [vmem:[#allocation3] sm:$0xff]
        %v1176 = vld [vmem:[#allocation3 + $0x8] sm:$0xff]
        %v1177 = vld [vmem:[#allocation3 + $0x10] sm:$0xff]
        %v1178 = vld [vmem:[#allocation3 + $0x18] sm:$0xff]
        %1179 = vxpose.xlu0.b32.start [1/16] %v1175, 128
        %1180 = vxpose.xlu0.b32.cont [2/16] %v1176, 128
        %1181 = vxpose.xlu0.b32.cont [3/16] %v1177, 128
        %1182 = vxpose.xlu0.b32.cont [4/16] %v1178, 128
        %1183 = vxpose.xlu0.b32.cont [5/16] 0.0, 128
        %1184 = vxpose.xlu0.b32.cont [6/16] 0.0, 128
        %1185 = vxpose.xlu0.b32.cont [7/16] 0.0, 128
        %1186 = vxpose.xlu0.b32.cont [8/16] 0.0, 128
        %1187 = vxpose.xlu0.b32.cont [9/16] 0.0, 128
        %1188 = vxpose.xlu0.b32.cont [10/16] 0.0, 128
        %1189 = vxpose.xlu0.b32.cont [11/16] 0.0, 128
        %1190 = vxpose.xlu0.b32.cont [12/16] 0.0, 128
        %1191 = vxpose.xlu0.b32.cont [13/16] 0.0, 128
        %1192 = vxpose.xlu0.b32.cont [14/16] 0.0, 128
        %1193 = vxpose.xlu0.b32.cont [15/16] 0.0, 128
        %1194 = vxpose.xlu0.b32.end [16/16] 0.0, 128
        %v1195 = vpop.trf.xlu0
        %v1196 = vpop.trf.xlu0
        %v1197 = vpop.trf.xlu0
        %v1198 = vpop.trf.xlu0
        %v1199 = vpop.trf.xlu0
        %v1200 = vpop.trf.xlu0
        %v1201 = vpop.trf.xlu0
        %v1202 = vpop.trf.xlu0
        %v1203 = vpop.trf.xlu0
        %v1204 = vpop.trf.xlu0
        %v1205 = vpop.trf.xlu0
        %v1206 = vpop.trf.xlu0
        %v1207 = vpop.trf.xlu0
        %v1208 = vpop.trf.xlu0
        %v1209 = vpop.trf.xlu0
        %v1210 = vpop.trf.xlu0
        %v1211 = vpack.c.bf16 %v1195, %v1195
        %v1212 = vld [vmem:[%s3] sm:$0xf]
        %v1213 = vld [vmem:[%s3 + $0x4] sm:$0xf]
        %v1214 = vld [vmem:[%s3 + $0x8] sm:$0xf]
        %v1215 = vld [vmem:[%s3 + $0xc] sm:$0xf]
        %v1216 = vld [vmem:[#allocation7] sm:$0x1]
        %v1218 = vlaneseq
        %v1219 = vshrl.u32 %v1218, 7
        %v1220 = vsub.s32 0, %v1219
        %v1221 = vrot.slane %v1216, %v1220
        %v1227 = vunpack.c.l.b16 %v1212
        %v1228 = vunpack.c.l.b16 %v1213
        %v1229 = vunpack.c.l.b16 %v1214
        %v1230 = vunpack.c.l.b16 %v1215
        %v1231 = vpack.c.b16 %v1228, %v1227
        %v1232 = vpack.c.b16 %v1230, %v1229
        %v1236 = vsel %vm540, %v1211, 0
        %1238 = vmatprep.subr.bf16.mxu0 0
        %1239 = vmatpush1.bf16.msra.mxu0 0
        %1240 = vmatprep.subr.bf16.mxu0 0
        %1241 = vmatpush1.bf16.msra.mxu0 0
        %1242 = vmatprep.subr.bf16.mxu0 0
        %1243 = vmatpush1.bf16.msra.mxu0 0
        %1244 = vmatprep.subr.bf16.mxu0 0
        %1245 = vmatpush1.bf16.msra.mxu0 0
        %1246 = vmatprep.subr.bf16.mxu0 0
        %1247 = vmatpush1.bf16.msra.mxu0 0
        %1248 = vmatprep.subr.bf16.mxu0 0
        %1249 = vmatpush1.bf16.msra.mxu0 0
        %1250 = vmatprep.subr.bf16.mxu0 0
        %1251 = vmatpush1.bf16.msra.mxu0 %v1232
        %1252 = vmatprep.subr.bf16.mxu0 0
        %1253 = vmatpush1.bf16.msra.mxu0 %v1231
        %1254 = vmatprep.subr.bf16.mxu0 0
        %1255 = vmatpush2.bf16.msra.mxu0 0
        %1256 = vmatprep.subr.bf16.mxu0 0
        %1257 = vmatpush2.bf16.msra.mxu0 0
        %1258 = vmatprep.subr.bf16.mxu0 0
        %1259 = vmatpush2.bf16.msra.mxu0 0
        %1260 = vmatprep.subr.bf16.mxu0 0
        %1261 = vmatpush2.bf16.msra.mxu0 0
        %1262 = vmatprep.subr.bf16.mxu0 0
        %1263 = vmatpush2.bf16.msra.mxu0 0
        %1264 = vmatprep.subr.bf16.mxu0 0
        %1265 = vmatpush2.bf16.msra.mxu0 0
        %1266 = vmatprep.subr.bf16.mxu0 0
        %1267 = vmatpush2.bf16.msra.mxu0 0
        %1268 = vmatprep.subr.bf16.mxu0 0
        %1269 = vmatpush2.bf16.msra.mxu0 0
        %1270 = vmatprep.mubr.bf16.mxu0 0
        %1271 = vmatmul.mubr.bf16.gmra.mxu0 %v1236
        %v1272 = vpop.f32.mrf.mxu0
        %v1273 = vadd.f32 %v1221, %v1272
        %v1274 = vpop.f32.mrf.mxu0
        %v1275 = vpop.f32.mrf.mxu0
        %v1276 = vpop.f32.mrf.mxu0
        %1277 = vdwg.mxu0
        %v1278 = vadd.f32 %v515, %v1273
        %v1279 = vld [vmem:[#allocation9] sm:$0x1]
        %v1280 = vld [vmem:[#allocation10] sm:$0x1]
        %v1281 = vsel %vm540, %v1278, 0.0
        %1282 = vadd.xlane.f32.xlu0 %v1281
        %v1283 = vpop.xlane.xlu0 %1282
        %v1284 = vrcp.pop 32.0
        %v1285 = vmul.f32 %v1283, %v1284
        %v1286 = vsub.f32 %v1278, %v1285
        %v1287 = vmul.f32 %v1286, %v1286
        %v1288 = vsel %vm540, %v1287, 0.0
        %1289 = vadd.xlane.f32.xlu0 %v1288
        %v1290 = vpop.xlane.xlu0 %1289
        %v1291 = vmul.f32 %v1290, %v1284
        %v1292 = vadd.f32 %v1291, 1e-05
        %v1293 = vrsqrt.pop %v1292
        %v1294 = vmul.f32 %v1286, %v1293
        %v1296 = vlaneseq
        %v1297 = vshrl.u32 %v1296, 7
        %v1298 = vsub.s32 0, %v1297
        %v1299 = vrot.slane %v1279, %v1298
        %v1301 = vmul.f32 %v1294, %v1299
        %v1303 = vlaneseq
        %v1304 = vshrl.u32 %v1303, 7
        %v1305 = vsub.s32 0, %v1304
        %v1306 = vrot.slane %v1280, %v1305
        %v1308 = vadd.f32 %v1301, %v1306
        %v1309 = vpack.c.bf16 %v1308, %v1308
        %v1310 = vld [vmem:[#allocation12] sm:$0xf]
        %v1311 = vld [vmem:[#allocation12 + $0x4] sm:$0xf]
        %v1312 = vld [vmem:[#allocation12 + $0x8] sm:$0xf]
        %v1313 = vld [vmem:[#allocation12 + $0xc] sm:$0xf]
        %v1314 = vld [vmem:[#allocation13] sm:$0x1]
        %v1316 = vlaneseq
        %v1317 = vshrl.u32 %v1316, 7
        %v1318 = vsub.s32 0, %v1317
        %v1319 = vrot.slane %v1314, %v1318
        %v1325 = vunpack.c.l.b16 %v1310
        %v1326 = vunpack.c.l.b16 %v1311
        %v1327 = vunpack.c.l.b16 %v1312
        %v1328 = vunpack.c.l.b16 %v1313
        %v1329 = vpack.c.b16 %v1326, %v1325
        %v1330 = vpack.c.b16 %v1328, %v1327
        %v1334 = vsel %vm540, %v1309, 0
        %1336 = vmatprep.subr.bf16.mxu0 0
        %1337 = vmatpush1.bf16.msra.mxu0 0
        %1338 = vmatprep.subr.bf16.mxu0 0
        %1339 = vmatpush1.bf16.msra.mxu0 0
        %1340 = vmatprep.subr.bf16.mxu0 0
        %1341 = vmatpush1.bf16.msra.mxu0 0
        %1342 = vmatprep.subr.bf16.mxu0 0
        %1343 = vmatpush1.bf16.msra.mxu0 0
        %1344 = vmatprep.subr.bf16.mxu0 0
        %1345 = vmatpush1.bf16.msra.mxu0 0
        %1346 = vmatprep.subr.bf16.mxu0 0
        %1347 = vmatpush1.bf16.msra.mxu0 0
        %1348 = vmatprep.subr.bf16.mxu0 0
        %1349 = vmatpush1.bf16.msra.mxu0 %v1330
        %1350 = vmatprep.subr.bf16.mxu0 0
        %1351 = vmatpush1.bf16.msra.mxu0 %v1329
        %1352 = vmatprep.subr.bf16.mxu0 0
        %1353 = vmatpush2.bf16.msra.mxu0 0
        %1354 = vmatprep.subr.bf16.mxu0 0
        %1355 = vmatpush2.bf16.msra.mxu0 0
        %1356 = vmatprep.subr.bf16.mxu0 0
        %1357 = vmatpush2.bf16.msra.mxu0 0
        %1358 = vmatprep.subr.bf16.mxu0 0
        %1359 = vmatpush2.bf16.msra.mxu0 0
        %1360 = vmatprep.subr.bf16.mxu0 0
        %1361 = vmatpush2.bf16.msra.mxu0 0
        %1362 = vmatprep.subr.bf16.mxu0 0
        %1363 = vmatpush2.bf16.msra.mxu0 0
        %1364 = vmatprep.subr.bf16.mxu0 0
        %1365 = vmatpush2.bf16.msra.mxu0 0
        %1366 = vmatprep.subr.bf16.mxu0 0
        %1367 = vmatpush2.bf16.msra.mxu0 0
        %1368 = vmatprep.mubr.bf16.mxu0 0
        %1369 = vmatmul.mubr.bf16.gmra.mxu0 %v1334
        %v1370 = vpop.f32.mrf.mxu0
        %v1371 = vadd.f32 %v1319, %v1370
        %v1372 = vpop.f32.mrf.mxu0
        %v1373 = vpop.f32.mrf.mxu0
        %v1374 = vpop.f32.mrf.mxu0
        %1375 = vdwg.mxu0
        %v1376 = vmax.f32 %v1371, 0.0
        %v1377 = vpack.c.bf16 %v1376, %v1376
        %v1378 = vld [vmem:[%s9] sm:$0xf]
        %v1379 = vld [vmem:[%s9 + $0x4] sm:$0xf]
        %v1380 = vld [vmem:[%s9 + $0x8] sm:$0xf]
        %v1381 = vld [vmem:[%s9 + $0xc] sm:$0xf]
        %v1382 = vld [vmem:[%s9 + $0x10] sm:$0xf]
        %v1383 = vld [vmem:[%s9 + $0x14] sm:$0xf]
        %v1384 = vld [vmem:[%s9 + $0x18] sm:$0xf]
        %v1385 = vld [vmem:[%s9 + $0x1c] sm:$0xf]
        %v1386 = vld [vmem:[%s10] sm:$0x1]
        %v1388 = vlaneseq
        %v1389 = vshrl.u32 %v1388, 7
        %v1390 = vsub.s32 0, %v1389
        %v1391 = vrot.slane %v1386, %v1390
        %v1401 = vunpack.c.l.b16 %v1378
        %v1402 = vunpack.c.l.b16 %v1379
        %v1403 = vunpack.c.l.b16 %v1380
        %v1404 = vunpack.c.l.b16 %v1381
        %v1405 = vunpack.c.l.b16 %v1382
        %v1406 = vunpack.c.l.b16 %v1383
        %v1407 = vunpack.c.l.b16 %v1384
        %v1408 = vunpack.c.l.b16 %v1385
        %v1409 = vpack.c.b16 %v1402, %v1401
        %v1410 = vpack.c.b16 %v1404, %v1403
        %v1411 = vpack.c.b16 %v1406, %v1405
        %v1412 = vpack.c.b16 %v1408, %v1407
        %vm1417 = vcmask 523264
        %v1419 = vsel %vm1417, %v1377, 0
        %1421 = vmatprep.subr.bf16.mxu0 0
        %1422 = vmatpush1.bf16.msra.mxu0 0
        %1423 = vmatprep.subr.bf16.mxu0 0
        %1424 = vmatpush1.bf16.msra.mxu0 0
        %1425 = vmatprep.subr.bf16.mxu0 0
        %1426 = vmatpush1.bf16.msra.mxu0 0
        %1427 = vmatprep.subr.bf16.mxu0 0
        %1428 = vmatpush1.bf16.msra.mxu0 0
        %1429 = vmatprep.subr.bf16.mxu0 0
        %1430 = vmatpush1.bf16.msra.mxu0 %v1412
        %1431 = vmatprep.subr.bf16.mxu0 0
        %1432 = vmatpush1.bf16.msra.mxu0 %v1411
        %1433 = vmatprep.subr.bf16.mxu0 0
        %1434 = vmatpush1.bf16.msra.mxu0 %v1410
        %1435 = vmatprep.subr.bf16.mxu0 0
        %1436 = vmatpush1.bf16.msra.mxu0 %v1409
        %1437 = vmatprep.subr.bf16.mxu0 0
        %1438 = vmatpush2.bf16.msra.mxu0 0
        %1439 = vmatprep.subr.bf16.mxu0 0
        %1440 = vmatpush2.bf16.msra.mxu0 0
        %1441 = vmatprep.subr.bf16.mxu0 0
        %1442 = vmatpush2.bf16.msra.mxu0 0
        %1443 = vmatprep.subr.bf16.mxu0 0
        %1444 = vmatpush2.bf16.msra.mxu0 0
        %1445 = vmatprep.subr.bf16.mxu0 0
        %1446 = vmatpush2.bf16.msra.mxu0 0
        %1447 = vmatprep.subr.bf16.mxu0 0
        %1448 = vmatpush2.bf16.msra.mxu0 0
        %1449 = vmatprep.subr.bf16.mxu0 0
        %1450 = vmatpush2.bf16.msra.mxu0 0
        %1451 = vmatprep.subr.bf16.mxu0 0
        %1452 = vmatpush2.bf16.msra.mxu0 0
        %1453 = vmatprep.mubr.bf16.mxu0 0
        %1454 = vmatmul.mubr.bf16.gmra.mxu0 %v1419
        %v1455 = vpop.f32.mrf.mxu0
        %v1456 = vadd.f32 %v1391, %v1455
        %v1457 = vpop.f32.mrf.mxu0
        %v1458 = vpop.f32.mrf.mxu0
        %v1459 = vpop.f32.mrf.mxu0
        %1460 = vdwg.mxu0
        %v1461 = vadd.f32 %v1308, %v1456
        %v1462 = vld [vmem:[%s11] sm:$0x1]
        %v1463 = vld [vmem:[%s12] sm:$0x1]
        %v1464 = vsel %vm540, %v1461, 0.0
        %1465 = vadd.xlane.f32.xlu0 %v1464
        %v1466 = vpop.xlane.xlu0 %1465
        %v1467 = vmul.f32 %v1466, %v1284
        %v1468 = vsub.f32 %v1461, %v1467
        %v1469 = vmul.f32 %v1468, %v1468
        %v1470 = vsel %vm540, %v1469, 0.0
        %1471 = vadd.xlane.f32.xlu0 %v1470
        %v1472 = vpop.xlane.xlu0 %1471
        %v1473 = vmul.f32 %v1472, %v1284
        %v1474 = vadd.f32 %v1473, 1e-05
        %v1475 = vrsqrt.pop %v1474
        %v1476 = vmul.f32 %v1468, %v1475
        %v1478 = vlaneseq
        %v1479 = vshrl.u32 %v1478, 7
        %v1480 = vsub.s32 0, %v1479
        %v1481 = vrot.slane %v1462, %v1480
        %v1483 = vmul.f32 %v1476, %v1481
        %v1485 = vlaneseq
        %v1486 = vshrl.u32 %v1485, 7
        %v1487 = vsub.s32 0, %v1486
        %v1488 = vrot.slane %v1463, %v1487
        %v1490 = vadd.f32 %v1483, %v1488
        %1491 = vst.msk [vmem:[%s509] sm:$0xff] %vm540, %v1490
        %s1492 = sand.u32 %s317, 1
        %s1493 = scalar_lea.sflag [#allocation6], %s1492
        %s1494 = sand.u32 %s317, 1
        %s1495 = smul.addr %s1494, 8
        %s1496 = scalar_lea.vmem [#allocation15], %s1495
        // Predicated region
        $region97: #{tpu_custom_call.1} parent=71 // pred_check
          %p1497 = pneg %p327
        $region98: #{tpu_custom_call.1} parent=71 // pred_check_branch
          %1499 = sbr.rel (%p1497) target = $region100
        $region99: #{tpu_custom_call.1} parent=71 // pred_region
          %s1501 = ssub.s32 128, 128
          %1502 = vsyncadd %s1493, %s1501
          %s1503 = smul.addr %s31, 128
          %s1504 = scalar_lea.hbm %s13, %s1503
          %s1506 = sshll.u32 %s1496, 4
          %s1507 = int_to_ptr.vmem [resolvable:$true] %s1506
          %1509 = dma.vmem_to_hbm [thread:$0]  %s1507, 128, %s1504, %s1493
        $region100: #{tpu_custom_call.1} parent=71 // pred_fallthru
          _
      $region72: #{tpu_custom_call.1} parent=5 // pred_fallthru
        _
      %p1510 = scmp.le.s32.totalorder 2, %s26
      // Predicated region
      $region101: #{tpu_custom_call.1} parent=5 // pred_check
        %p1511 = pneg %p1510
      $region102: #{tpu_custom_call.1} parent=5 // pred_check_branch
        %1513 = sbr.rel (%p1511) target = $region104
      $region103: #{tpu_custom_call.1} parent=5 // pred_region
        %s1514 = ssub.s32 %s26, 2
        // Predicated region
        $region105: #{tpu_custom_call.1} parent=103 // pred_check
          %p1515 = pneg %p333
        $region106: #{tpu_custom_call.1} parent=103 // pred_check_branch
          %1517 = sbr.rel (%p1515) target = $region108
        $region107: #{tpu_custom_call.1} parent=103 // pred_region
          %s1518 = sand.u32 %s318, 1
          %s1519 = scalar_lea.sflag [#allocation6], %s1518
          %s1520 = sand.u32 %s318, 1
          %s1521 = smul.addr %s1520, 8
          %s1522 = scalar_lea.vmem [#allocation15], %s1521
          %1523 = dma.done %s1519, 128
        $region108: #{tpu_custom_call.1} parent=103 // pred_fallthru
          _
      $region104: #{tpu_custom_call.1} parent=5 // pred_fallthru
        _
    $region6: #{tpu_custom_call.1} parent=1 // loop_footer
      %s30 = sadd.s32 1, %s26
    $region7: #{tpu_custom_call.1} parent=1 // loop_footer_branch
      %25 = sbr.rel target = $region3
    $region8: #{tpu_custom_call.1} parent=1 // loop_exit
      _
    %1524 = vsyncpa [#allocation5], 1
    %s1525 = scalar_lea.sflag [#allocation5], 1
    %1526 = vsyncpa %s1525, 1
    %1527 = vsyncpa [#allocation8], 1
    %1528 = vsyncpa [#allocation11], 1
    %1529 = vsyncpa [#allocation14], 1
    %1530 = vsyncpa [#allocation6], 1
    %s1531 = scalar_lea.sflag [#allocation6], 1
    %1532 = vsyncpa %s1531, 1

</llo_original>
